<compile_context>
chip_gen: v7x
topology: tpu7x:2x2x1
jax: 0.10.0
libtpu: 0.0.40
codegen_flags: <defaults>
</compile_context>

<pallas_src>
import functools

import jax
import jax.numpy as jnp
from jax.experimental import pallas as pl
from jax.experimental.pallas import tpu as pltpu


# ---------------------------------------------------------------------------
# small helpers
# ---------------------------------------------------------------------------

def _round_up(x, m):
    return ((x + m - 1) // m) * m


def _choose_tm(M, target=1024, min_steps=4):
    """Large row tile (multiple of 8); keep >= min_steps grid steps for big M
    so both v7x TensorCores get work. Small M just uses one full tile."""
    tm = min(target, _round_up(M, 8))
    while tm > 256 and pl.cdiv(M, tm) < min_steps:
        tm = _round_up(tm // 2, 8)
    return max(tm, 8)


def _const_specs(shapes, single_buffer):
    """BlockSpecs for operands whose index_map is constant (weights/biases)."""
    specs = []
    for shp in shapes:
        idx = lambda *_, n=len(shp): (0,) * n
        if single_buffer:
            specs.append(pl.BlockSpec(shp, idx, pipeline_mode=pl.Buffered(1)))
        else:
            specs.append(pl.BlockSpec(shp, idx))
    return specs


_SINGLE_BUFFER_OK = [True]


def _call_with_fallback(build, args):
    """Try single-buffered constant specs; fall back to default buffering if
    this jax build rejects pipeline_mode=pl.Buffered(1)."""
    if _SINGLE_BUFFER_OK[0]:
        try:
            return build(True)(*args)
        except Exception:
            _SINGLE_BUFFER_OK[0] = False
    return build(False)(*args)


# ---------------------------------------------------------------------------
# Multi-head attention block: LayerNorm(Wo @ attention(x) + bo + x)
# ---------------------------------------------------------------------------

def _mha_ln_kernel(x_ref, wqkv_ref, wo_ref, bo_ref, g_ref, beta_ref, o_ref,
                   *, num_heads, ksz, vsz):
    # One batch element per grid step; batch dim squeezed -> x_ref is (S, F).
    x = x_ref[...].astype(jnp.float32)                        # (S, F)
    scale = 1.0 / (ksz ** 0.5)
    hk = num_heads * ksz

    # Fused Q/K/V projection: one big lane-dense MXU matmul.
    qkv = jnp.dot(x, wqkv_ref[...], preferred_element_type=jnp.float32)
    q_all = qkv[:, :hk]                                        # (S, H*K)
    k_all = qkv[:, hk:2 * hk]                                  # (S, H*K)
    v_all = qkv[:, 2 * hk:]                                    # (S, H*V)

    # TODO(synk): attention is not flash-tiled; fine for short sequences.
    head_outs = []
    for h in range(num_heads):                                 # static unroll
        q = q_all[:, h * ksz:(h + 1) * ksz]
        k = k_all[:, h * ksz:(h + 1) * ksz]
        v = v_all[:, h * vsz:(h + 1) * vsz]
        s = jax.lax.dot_general(q, k, (((1,), (1,)), ((), ())),
                                preferred_element_type=jnp.float32) * scale
        s = s - jnp.max(s, axis=-1, keepdims=True)             # stable softmax
        e = jnp.exp(s)
        p = e / jnp.sum(e, axis=-1, keepdims=True)
        head_outs.append(jnp.dot(p, v, preferred_element_type=jnp.float32))
    o_all = jnp.concatenate(head_outs, axis=-1)                # (S, H*V)

    # Output projection + (dropout == identity) + residual.
    # TODO(synk): training-mode dropout (p=0.3) not implemented; eval semantics.
    y = jnp.dot(o_all, wo_ref[...], preferred_element_type=jnp.float32)
    y = y + bo_ref[...] + x

    eps = 1e-5
    mean = jnp.mean(y, axis=-1, keepdims=True)
    yc = y - mean
    var = jnp.mean(yc * yc, axis=-1, keepdims=True)
    out = yc * jax.lax.rsqrt(var + eps) * g_ref[...] + beta_ref[...]
    o_ref[...] = out.astype(o_ref.dtype)


def mha_normalized(x, mp, num_heads, ksz, vsz):
    """x: (B, S, F) f32.  Applies LayerNorm(MHA(x) + x)."""
    B, S, F = x.shape
    kern = functools.partial(_mha_ln_kernel,
                             num_heads=num_heads, ksz=ksz, vsz=vsz)

    def build(single_buf):
        consts = _const_specs(
            [mp["wqkv"].shape, mp["wo"].shape, (1, F), (1, F), (1, F)],
            single_buf)
        return pl.pallas_call(
            kern,
            out_shape=jax.ShapeDtypeStruct((B, S, F), x.dtype),
            grid_spec=pltpu.PrefetchScalarGridSpec(
                num_scalar_prefetch=0,
                grid=(B,),
                in_specs=[pl.BlockSpec((None, S, F), lambda b: (b, 0, 0))] + consts,
                out_specs=pl.BlockSpec((None, S, F), lambda b: (b, 0, 0)),
            ),
            compiler_params=pltpu.CompilerParams(
                dimension_semantics=("parallel",)),
        )

    args = (x, mp["wqkv"], mp["wo"], mp["bo"], mp["gamma"], mp["beta"])
    return _call_with_fallback(build, args)


# ---------------------------------------------------------------------------
# Feed-forward block: LayerNorm(Linear2(ReLU(Linear1(x))) + x)
# ---------------------------------------------------------------------------

def _ffn_ln_kernel(x_ref, w1_ref, b1_ref, w2_ref, b2_ref, g_ref, beta_ref, o_ref):
    x = x_ref[...]                                             # (tm, F) f32

    # Linear1 + ReLU: bf16 MXU operands, f32 accumulate; bias/ReLU in f32.
    h = jnp.dot(x.astype(jnp.bfloat16), w1_ref[...],
                preferred_element_type=jnp.float32)
    h = jnp.maximum(h + b1_ref[...], 0.0)

    # Linear2 + (dropout == identity) + residual.
    # TODO(synk): training-mode dropout (p=0.3) not implemented; eval semantics.
    y = jnp.dot(h.astype(jnp.bfloat16), w2_ref[...],
                preferred_element_type=jnp.float32)
    y = y + b2_ref[...] + x

    # LayerNorm over the feature axis (biased variance, eps matches PyTorch).
    eps = 1e-5
    mean = jnp.mean(y, axis=-1, keepdims=True)
    yc = y - mean
    var = jnp.mean(yc * yc, axis=-1, keepdims=True)
    out = yc * jax.lax.rsqrt(var + eps) * g_ref[...] + beta_ref[...]
    o_ref[...] = out.astype(o_ref.dtype)


def ffn_normalized(x2d, fp):
    """x2d: (M, F) f32 rows (batch*seq flattened).  Returns (M, F)."""
    M, F = x2d.shape
    Hp = fp["w1"].shape[1]                      # hidden already padded to 128k
    tm = _choose_tm(M)
    Mp = _round_up(M, tm)                       # padded tail instead of assert
    xp = x2d if Mp == M else jnp.pad(x2d, ((0, Mp - M), (0, 0)))

    def build(single_buf):
        consts = _const_specs(
            [(F, Hp), (1, Hp), (Hp, F), (1, F), (1, F), (1, F)], single_buf)
        return pl.pallas_call(
            _ffn_ln_kernel,
            out_shape=jax.ShapeDtypeStruct((Mp, F), x2d.dtype),
            grid_spec=pltpu.PrefetchScalarGridSpec(
                num_scalar_prefetch=0,
                grid=(Mp // tm,),
                in_specs=[pl.BlockSpec((tm, F), lambda i: (i, 0))] + consts,
                out_specs=pl.BlockSpec((tm, F), lambda i: (i, 0)),
            ),
            compiler_params=pltpu.CompilerParams(
                dimension_semantics=("parallel",)),
        )

    args = (xp, fp["w1"], fp["b1"], fp["w2"], fp["b2"], fp["gamma"], fp["beta"])
    out = _call_with_fallback(build, args)
    return out if Mp == M else out[:M]


# ---------------------------------------------------------------------------
# Encoder = number_layers x (MHA block -> FFN block)
# ---------------------------------------------------------------------------

def encoder_forward(x, layer_params, num_heads, ksz, vsz):
    B, S, F = x.shape
    for lp in layer_params:
        x = mha_normalized(x, lp["mha"], num_heads, ksz, vsz)
        x = ffn_normalized(x.reshape(B * S, F), lp["ffn"]).reshape(B, S, F)
    return x


# ---------------------------------------------------------------------------
# parameter construction (PyTorch-equivalent, x @ W orientation)
# ---------------------------------------------------------------------------

def init_raw_params(key, num_layers, F, num_heads, ksz, vsz, hidden):
    params = []
    for _ in range(num_layers):
        key, *ks = jax.random.split(key, 10)
        ks = iter(ks)
        rn = lambda shape, k: jax.random.normal(k, shape, jnp.float32) * 0.05
        params.append({
            "wq": rn((F, num_heads * ksz), next(ks)),
            "wk": rn((F, num_heads * ksz), next(ks)),
            "wv": rn((F, num_heads * vsz), next(ks)),
            "wo": rn((num_heads * vsz, F), next(ks)),
            "bo": rn((1, F), next(ks)),
            "ln1_g": jnp.ones((1, F), jnp.float32),
            "ln1_b": jnp.zeros((1, F), jnp.float32),
            "w1": rn((F, hidden), next(ks)),
            "b1": rn((1, hidden), next(ks)),
            "w2": rn((hidden, F), next(ks)),
            "b2": rn((1, F), next(ks)),
            "ln2_g": jnp.ones((1, F), jnp.float32),
            "ln2_b": jnp.zeros((1, F), jnp.float32),
        })
    return params


def prepare_kernel_params(raw, num_heads, ksz, vsz):
    """Fused QKV weight for the MHA kernel; bf16 + lane-padded hidden for the
    FFN kernel."""
    out = []
    for p in raw:
        hidden = p["w1"].shape[1]
        Hp = _round_up(hidden, 128)
        pad_h = Hp - hidden
        mha = {
            # (F, H*K + H*K + H*V): single lane-dense projection matmul.
            "wqkv": jnp.concatenate([p["wq"], p["wk"], p["wv"]], axis=1),
            "wo": p["wo"],                                    # (H*V, F)
            "bo": p["bo"], "gamma": p["ln1_g"], "beta": p["ln1_b"],
        }
        ffn = {
            "w1": jnp.pad(p["w1"], ((0, 0), (0, pad_h))).astype(jnp.bfloat16),
            "b1": jnp.pad(p["b1"], ((0, 0), (0, pad_h))),
            "w2": jnp.pad(p["w2"], ((0, pad_h), (0, 0))).astype(jnp.bfloat16),
            "b2": p["b2"], "gamma": p["ln2_g"], "beta": p["ln2_b"],
        }
        out.append({"mha": mha, "ffn": ffn})
    return out


# ---------------------------------------------------------------------------
# pure-JAX reference (matches the PyTorch forward, eval mode)
# ---------------------------------------------------------------------------

def _layernorm_ref(y, g, b, eps=1e-5):
    mu = y.mean(-1, keepdims=True)
    var = ((y - mu) ** 2).mean(-1, keepdims=True)
    return (y - mu) * jax.lax.rsqrt(var + eps) * g + b


def reference_encoder(x, raw, num_heads, ksz, vsz):
    B, S, F = x.shape
    for p in raw:
        q = (x @ p["wq"]).reshape(B, S, num_heads, ksz)
        k = (x @ p["wk"]).reshape(B, S, num_heads, ksz)
        v = (x @ p["wv"]).reshape(B, S, num_heads, vsz)
        q, k, v = (jnp.swapaxes(t, 1, 2) for t in (q, k, v))
        att = jnp.einsum("bhsk,bhtk->bhst", q, k) / (ksz ** 0.5)
        att = jax.nn.softmax(att, axis=-1)
        o = jnp.einsum("bhst,bhtv->bhsv", att, v)
        o = jnp.swapaxes(o, 1, 2).reshape(B, S, num_heads * vsz)
        x = _layernorm_ref(o @ p["wo"] + p["bo"] + x, p["ln1_g"], p["ln1_b"])
        h = jnp.maximum(x @ p["w1"] + p["b1"], 0.0)
        x = _layernorm_ref(h @ p["w2"] + p["b2"] + x, p["ln2_g"], p["ln2_b"])
    return x


# ---------------------------------------------------------------------------

if __name__ == "__main__":
    # Small shapes consistent with the module (scaled down from the defaults).
    BATCH, SEQ = 2, 8
    INPUT_SIZE, NUM_HEADS, KEY_SIZE, VALUE_SIZE = 128, 2, 64, 64
    HIDDEN_SIZE, NUM_LAYERS = 64, 2

    key = jax.random.PRNGKey(0)
    kx, kp = jax.random.split(key)
    x = jax.random.normal(kx, (BATCH, SEQ, INPUT_SIZE), jnp.float32)

    raw = init_raw_params(kp, NUM_LAYERS, INPUT_SIZE, NUM_HEADS,
                          KEY_SIZE, VALUE_SIZE, HIDDEN_SIZE)
    kparams = prepare_kernel_params(raw, NUM_HEADS, KEY_SIZE, VALUE_SIZE)

    out = encoder_forward(x, kparams, NUM_HEADS, KEY_SIZE, VALUE_SIZE)
    out = jax.block_until_ready(out)

    ref = reference_encoder(x, raw, NUM_HEADS, KEY_SIZE, VALUE_SIZE)
    assert out.shape == ref.shape
    # bf16 MXU operands in the FFN dots -> loose-but-meaningful tolerance.
    assert jnp.allclose(out, ref, atol=5e-2, rtol=5e-2), \
        float(jnp.max(jnp.abs(out - ref)))

    print("KERNEL_OK")
</pallas_src>

<mosaic_0001>
module attributes {stable_mosaic.version = 11 : i64} {
  func.func @_mha_ln_kernel(%arg0: i32, %arg1: memref<1x8x128xf32, #tpu.memory_space<vmem>>, %arg2: memref<128x384xf32, #tpu.memory_space<vmem>>, %arg3: memref<128x128xf32, #tpu.memory_space<vmem>>, %arg4: memref<1x128xf32, #tpu.memory_space<vmem>>, %arg5: memref<1x128xf32, #tpu.memory_space<vmem>>, %arg6: memref<1x128xf32, #tpu.memory_space<vmem>>, %arg7: memref<1x8x128xf32, #tpu.memory_space<vmem>>) attributes {dimension_semantics = [#tpu.dimension_semantics<parallel>], iteration_bounds = array<i64: 2>, scalar_prefetch = 0 : i64, scratch_operands = 0 : i64, tpu.core_type = #tpu.core_type<tc>, window_params = [{transform_indices = @transform_0, window_bounds = array<i64: 1, 8, 128>}, {pipeline_mode = #tpu.pipeline_mode<synchronous>, transform_indices = @transform_1, window_bounds = array<i64: 128, 384>}, {pipeline_mode = #tpu.pipeline_mode<synchronous>, transform_indices = @transform_2, window_bounds = array<i64: 128, 128>}, {pipeline_mode = #tpu.pipeline_mode<synchronous>, transform_indices = @transform_3, window_bounds = array<i64: 1, 128>}, {pipeline_mode = #tpu.pipeline_mode<synchronous>, transform_indices = @transform_4, window_bounds = array<i64: 1, 128>}, {pipeline_mode = #tpu.pipeline_mode<synchronous>, transform_indices = @transform_5, window_bounds = array<i64: 1, 128>}, {transform_indices = @transform_6, window_bounds = array<i64: 1, 8, 128>}]} {
    %c0 = arith.constant 0 : index
    %c0_0 = arith.constant 0 : index
    %c0_1 = arith.constant 0 : index
    %0 = vector.load %arg1[%c0, %c0_0, %c0_1] : memref<1x8x128xf32, #tpu.memory_space<vmem>>, vector<1x8x128xf32>
    %1 = vector.shape_cast %0 : vector<1x8x128xf32> to vector<8x128xf32>
    %c0_2 = arith.constant 0 : index
    %c0_3 = arith.constant 0 : index
    %2 = vector.load %arg2[%c0_2, %c0_3] : memref<128x384xf32, #tpu.memory_space<vmem>>, vector<128x384xf32>
    %cst = arith.constant dense<0.000000e+00> : vector<8x384xf32>
    %3 = tpu.matmul %1, %2, %cst {dimension_numbers = #tpu.dot_dimension_numbers<[1], [0], [0], [1], [0, 0, 1, 1], [], []>} : vector<8x128xf32>, vector<128x384xf32>, vector<8x384xf32> -> vector<8x384xf32>
    %4 = vector.extract_strided_slice %3 {offsets = [0, 0], sizes = [8, 128], strides = [1, 1]} : vector<8x384xf32> to vector<8x128xf32>
    %5 = vector.extract_strided_slice %3 {offsets = [0, 128], sizes = [8, 128], strides = [1, 1]} : vector<8x384xf32> to vector<8x128xf32>
    %6 = vector.extract_strided_slice %3 {offsets = [0, 256], sizes = [8, 128], strides = [1, 1]} : vector<8x384xf32> to vector<8x128xf32>
    %7 = vector.extract_strided_slice %4 {offsets = [0, 0], sizes = [8, 64], strides = [1, 1]} : vector<8x128xf32> to vector<8x64xf32>
    %8 = vector.extract_strided_slice %5 {offsets = [0, 0], sizes = [8, 64], strides = [1, 1]} : vector<8x128xf32> to vector<8x64xf32>
    %9 = vector.extract_strided_slice %6 {offsets = [0, 0], sizes = [8, 64], strides = [1, 1]} : vector<8x128xf32> to vector<8x64xf32>
    %cst_4 = arith.constant dense<0.000000e+00> : vector<8x8xf32>
    %10 = tpu.matmul %7, %8, %cst_4 {dimension_numbers = #tpu.dot_dimension_numbers<[1], [1], [0], [0], [0, 0, 1, 0], [], []>} : vector<8x64xf32>, vector<8x64xf32>, vector<8x8xf32> -> vector<8x8xf32>
    %cst_5 = arith.constant 1.250000e-01 : f32
    %11 = vector.broadcast %cst_5 : f32 to vector<8x8xf32>
    %12 = arith.mulf %10, %11 : vector<8x8xf32>
    %cst_6 = arith.constant dense<0xFF800000> : vector<8xf32>
    %13 = vector.multi_reduction <maximumf>, %12, %cst_6 [1] : vector<8x8xf32> to vector<8xf32>
    %14 = vector.shape_cast %13 : vector<8xf32> to vector<8x1xf32>
    %15 = vector.broadcast %14 : vector<8x1xf32> to vector<8x8xf32>
    %16 = arith.subf %12, %15 : vector<8x8xf32>
    %17 = math.exp %16 : vector<8x8xf32>
    %cst_7 = arith.constant dense<0.000000e+00> : vector<8xf32>
    %18 = vector.multi_reduction <add>, %17, %cst_7 [1] : vector<8x8xf32> to vector<8xf32>
    %19 = vector.shape_cast %18 : vector<8xf32> to vector<8x1xf32>
    %20 = vector.broadcast %19 : vector<8x1xf32> to vector<8x8xf32>
    %21 = arith.divf %17, %20 : vector<8x8xf32>
    %cst_8 = arith.constant dense<0.000000e+00> : vector<8x64xf32>
    %22 = tpu.matmul %21, %9, %cst_8 {dimension_numbers = #tpu.dot_dimension_numbers<[1], [0], [0], [1], [0, 0, 1, 1], [], []>} : vector<8x8xf32>, vector<8x64xf32>, vector<8x64xf32> -> vector<8x64xf32>
    %23 = vector.extract_strided_slice %4 {offsets = [0, 64], sizes = [8, 64], strides = [1, 1]} : vector<8x128xf32> to vector<8x64xf32>
    %24 = vector.extract_strided_slice %5 {offsets = [0, 64], sizes = [8, 64], strides = [1, 1]} : vector<8x128xf32> to vector<8x64xf32>
    %25 = vector.extract_strided_slice %6 {offsets = [0, 64], sizes = [8, 64], strides = [1, 1]} : vector<8x128xf32> to vector<8x64xf32>
    %cst_9 = arith.constant dense<0.000000e+00> : vector<8x8xf32>
    %26 = tpu.matmul %23, %24, %cst_9 {dimension_numbers = #tpu.dot_dimension_numbers<[1], [1], [0], [0], [0, 0, 1, 0], [], []>} : vector<8x64xf32>, vector<8x64xf32>, vector<8x8xf32> -> vector<8x8xf32>
    %cst_10 = arith.constant 1.250000e-01 : f32
    %27 = vector.broadcast %cst_10 : f32 to vector<8x8xf32>
    %28 = arith.mulf %26, %27 : vector<8x8xf32>
    %cst_11 = arith.constant dense<0xFF800000> : vector<8xf32>
    %29 = vector.multi_reduction <maximumf>, %28, %cst_11 [1] : vector<8x8xf32> to vector<8xf32>
    %30 = vector.shape_cast %29 : vector<8xf32> to vector<8x1xf32>
    %31 = vector.broadcast %30 : vector<8x1xf32> to vector<8x8xf32>
    %32 = arith.subf %28, %31 : vector<8x8xf32>
    %33 = math.exp %32 : vector<8x8xf32>
    %cst_12 = arith.constant dense<0.000000e+00> : vector<8xf32>
    %34 = vector.multi_reduction <add>, %33, %cst_12 [1] : vector<8x8xf32> to vector<8xf32>
    %35 = vector.shape_cast %34 : vector<8xf32> to vector<8x1xf32>
    %36 = vector.broadcast %35 : vector<8x1xf32> to vector<8x8xf32>
    %37 = arith.divf %33, %36 : vector<8x8xf32>
    %cst_13 = arith.constant dense<0.000000e+00> : vector<8x64xf32>
    %38 = tpu.matmul %37, %25, %cst_13 {dimension_numbers = #tpu.dot_dimension_numbers<[1], [0], [0], [1], [0, 0, 1, 1], [], []>} : vector<8x8xf32>, vector<8x64xf32>, vector<8x64xf32> -> vector<8x64xf32>
    %39 = tpu.concatenate %22, %38 in 1 : vector<8x64xf32>, vector<8x64xf32> -> vector<8x128xf32>
    %c0_14 = arith.constant 0 : index
    %c0_15 = arith.constant 0 : index
    %40 = vector.load %arg3[%c0_14, %c0_15] : memref<128x128xf32, #tpu.memory_space<vmem>>, vector<128x128xf32>
    %cst_16 = arith.constant dense<0.000000e+00> : vector<8x128xf32>
    %41 = tpu.matmul %39, %40, %cst_16 {dimension_numbers = #tpu.dot_dimension_numbers<[1], [0], [0], [1], [0, 0, 1, 1], [], []>} : vector<8x128xf32>, vector<128x128xf32>, vector<8x128xf32> -> vector<8x128xf32>
    %c0_17 = arith.constant 0 : index
    %c0_18 = arith.constant 0 : index
    %42 = vector.load %arg4[%c0_17, %c0_18] : memref<1x128xf32, #tpu.memory_space<vmem>>, vector<1x128xf32>
    %43 = vector.broadcast %42 : vector<1x128xf32> to vector<8x128xf32>
    %44 = arith.addf %41, %43 : vector<8x128xf32>
    %45 = arith.addf %44, %1 : vector<8x128xf32>
    %cst_19 = arith.constant dense<0.000000e+00> : vector<8xf32>
    %46 = vector.multi_reduction <add>, %45, %cst_19 [1] : vector<8x128xf32> to vector<8xf32>
    %47 = vector.shape_cast %46 : vector<8xf32> to vector<8x1xf32>
    %cst_20 = arith.constant 1.280000e+02 : f32
    %48 = vector.broadcast %cst_20 : f32 to vector<8x1xf32>
    %49 = arith.divf %47, %48 : vector<8x1xf32>
    %50 = vector.broadcast %49 : vector<8x1xf32> to vector<8x128xf32>
    %51 = arith.subf %45, %50 : vector<8x128xf32>
    %52 = arith.mulf %51, %51 : vector<8x128xf32>
    %cst_21 = arith.constant dense<0.000000e+00> : vector<8xf32>
    %53 = vector.multi_reduction <add>, %52, %cst_21 [1] : vector<8x128xf32> to vector<8xf32>
    %54 = vector.shape_cast %53 : vector<8xf32> to vector<8x1xf32>
    %cst_22 = arith.constant 1.280000e+02 : f32
    %55 = vector.broadcast %cst_22 : f32 to vector<8x1xf32>
    %56 = arith.divf %54, %55 : vector<8x1xf32>
    %cst_23 = arith.constant 9.99999974E-6 : f32
    %57 = vector.broadcast %cst_23 : f32 to vector<8x1xf32>
    %58 = arith.addf %56, %57 : vector<8x1xf32>
    %59 = math.rsqrt %58 : vector<8x1xf32>
    %60 = vector.broadcast %59 : vector<8x1xf32> to vector<8x128xf32>
    %61 = arith.mulf %51, %60 : vector<8x128xf32>
    %c0_24 = arith.constant 0 : index
    %c0_25 = arith.constant 0 : index
    %62 = vector.load %arg5[%c0_24, %c0_25] : memref<1x128xf32, #tpu.memory_space<vmem>>, vector<1x128xf32>
    %63 = vector.broadcast %62 : vector<1x128xf32> to vector<8x128xf32>
    %64 = arith.mulf %61, %63 : vector<8x128xf32>
    %c0_26 = arith.constant 0 : index
    %c0_27 = arith.constant 0 : index
    %65 = vector.load %arg6[%c0_26, %c0_27] : memref<1x128xf32, #tpu.memory_space<vmem>>, vector<1x128xf32>
    %66 = vector.broadcast %65 : vector<1x128xf32> to vector<8x128xf32>
    %67 = arith.addf %64, %66 : vector<8x128xf32>
    %c0_28 = arith.constant 0 : index
    %c0_29 = arith.constant 0 : index
    %c0_30 = arith.constant 0 : index
    %68 = vector.load %arg7[%c0_28, %c0_29, %c0_30] : memref<1x8x128xf32, #tpu.memory_space<vmem>>, vector<1x8x128xf32>
    %69 = vector.shape_cast %68 : vector<1x8x128xf32> to vector<8x128xf32>
    %70 = vector.shape_cast %67 : vector<8x128xf32> to vector<1x8x128xf32>
    tpu.vector_store %arg7[%c0_28, %c0_29, %c0_30], %70 {strides = array<i32>} : memref<1x8x128xf32, #tpu.memory_space<vmem>>, vector<1x8x128xf32>,
    return
  }
  func.func @transform_0(%arg0: i32) -> (i32, i32, i32) {
    %c0_i32 = arith.constant 0 : i32
    %c0_i32_0 = arith.constant 0 : i32
    %c0_i32_1 = arith.constant 0 : i32
    return %arg0, %c0_i32, %c0_i32_0 : i32, i32, i32
  }
  func.func @transform_1(%arg0: i32) -> (i32, i32) {
    %c0_i32 = arith.constant 0 : i32
    %c0_i32_0 = arith.constant 0 : i32
    %c0_i32_1 = arith.constant 0 : i32
    return %c0_i32, %c0_i32_0 : i32, i32
  }
  func.func @transform_2(%arg0: i32) -> (i32, i32) {
    %c0_i32 = arith.constant 0 : i32
    %c0_i32_0 = arith.constant 0 : i32
    %c0_i32_1 = arith.constant 0 : i32
    return %c0_i32, %c0_i32_0 : i32, i32
  }
  func.func @transform_3(%arg0: i32) -> (i32, i32) {
    %c0_i32 = arith.constant 0 : i32
    %c0_i32_0 = arith.constant 0 : i32
    %c0_i32_1 = arith.constant 0 : i32
    return %c0_i32, %c0_i32_0 : i32, i32
  }
  func.func @transform_4(%arg0: i32) -> (i32, i32) {
    %c0_i32 = arith.constant 0 : i32
    %c0_i32_0 = arith.constant 0 : i32
    %c0_i32_1 = arith.constant 0 : i32
    return %c0_i32, %c0_i32_0 : i32, i32
  }
  func.func @transform_5(%arg0: i32) -> (i32, i32) {
    %c0_i32 = arith.constant 0 : i32
    %c0_i32_0 = arith.constant 0 : i32
    %c0_i32_1 = arith.constant 0 : i32
    return %c0_i32, %c0_i32_0 : i32, i32
  }
  func.func @transform_6(%arg0: i32) -> (i32, i32, i32) {
    %c0_i32 = arith.constant 0 : i32
    %c0_i32_0 = arith.constant 0 : i32
    %c0_i32_1 = arith.constant 0 : i32
    return %arg0, %c0_i32, %c0_i32_0 : i32, i32, i32
  }
}

module attributes {stable_mosaic.version = 11 : i64} {
  func.func @_mha_ln_kernel(%arg0: i32, %arg1: memref<1x8x128xf32, #tpu.memory_space<vmem>>, %arg2: memref<128x384xf32, #tpu.memory_space<vmem>>, %arg3: memref<128x128xf32, #tpu.memory_space<vmem>>, %arg4: memref<1x128xf32, #tpu.memory_space<vmem>>, %arg5: memref<1x128xf32, #tpu.memory_space<vmem>>, %arg6: memref<1x128xf32, #tpu.memory_space<vmem>>, %arg7: memref<1x8x128xf32, #tpu.memory_space<vmem>>) attributes {dimension_semantics = [#tpu.dimension_semantics<parallel>], iteration_bounds = array<i64: 2>, scalar_prefetch = 0 : i64, scratch_operands = 0 : i64, tpu.core_type = #tpu.core_type<tc>, window_params = [{transform_indices = @transform_0, window_bounds = array<i64: 1, 8, 128>}, {pipeline_mode = #tpu.pipeline_mode<synchronous>, transform_indices = @transform_1, window_bounds = array<i64: 128, 384>}, {pipeline_mode = #tpu.pipeline_mode<synchronous>, transform_indices = @transform_2, window_bounds = array<i64: 128, 128>}, {pipeline_mode = #tpu.pipeline_mode<synchronous>, transform_indices = @transform_3, window_bounds = array<i64: 1, 128>}, {pipeline_mode = #tpu.pipeline_mode<synchronous>, transform_indices = @transform_4, window_bounds = array<i64: 1, 128>}, {pipeline_mode = #tpu.pipeline_mode<synchronous>, transform_indices = @transform_5, window_bounds = array<i64: 1, 128>}, {transform_indices = @transform_6, window_bounds = array<i64: 1, 8, 128>}]} {
    %c0 = arith.constant 0 : index
    %c0_0 = arith.constant 0 : index
    %c0_1 = arith.constant 0 : index
    %0 = vector.load %arg1[%c0, %c0_0, %c0_1] : memref<1x8x128xf32, #tpu.memory_space<vmem>>, vector<1x8x128xf32>
    %1 = vector.shape_cast %0 : vector<1x8x128xf32> to vector<8x128xf32>
    %c0_2 = arith.constant 0 : index
    %c0_3 = arith.constant 0 : index
    %2 = vector.load %arg2[%c0_2, %c0_3] : memref<128x384xf32, #tpu.memory_space<vmem>>, vector<128x384xf32>
    %cst = arith.constant dense<0.000000e+00> : vector<8x384xf32>
    %3 = tpu.matmul %1, %2, %cst {dimension_numbers = #tpu.dot_dimension_numbers<[1], [0], [0], [1], [0, 0, 1, 1], [], []>} : vector<8x128xf32>, vector<128x384xf32>, vector<8x384xf32> -> vector<8x384xf32>
    %4 = vector.extract_strided_slice %3 {offsets = [0, 0], sizes = [8, 128], strides = [1, 1]} : vector<8x384xf32> to vector<8x128xf32>
    %5 = vector.extract_strided_slice %3 {offsets = [0, 128], sizes = [8, 128], strides = [1, 1]} : vector<8x384xf32> to vector<8x128xf32>
    %6 = vector.extract_strided_slice %3 {offsets = [0, 256], sizes = [8, 128], strides = [1, 1]} : vector<8x384xf32> to vector<8x128xf32>
    %7 = vector.extract_strided_slice %4 {offsets = [0, 0], sizes = [8, 64], strides = [1, 1]} : vector<8x128xf32> to vector<8x64xf32>
    %8 = vector.extract_strided_slice %5 {offsets = [0, 0], sizes = [8, 64], strides = [1, 1]} : vector<8x128xf32> to vector<8x64xf32>
    %9 = vector.extract_strided_slice %6 {offsets = [0, 0], sizes = [8, 64], strides = [1, 1]} : vector<8x128xf32> to vector<8x64xf32>
    %cst_4 = arith.constant dense<0.000000e+00> : vector<8x8xf32>
    %10 = tpu.matmul %7, %8, %cst_4 {dimension_numbers = #tpu.dot_dimension_numbers<[1], [1], [0], [0], [0, 0, 1, 0], [], []>} : vector<8x64xf32>, vector<8x64xf32>, vector<8x8xf32> -> vector<8x8xf32>
    %cst_5 = arith.constant 1.250000e-01 : f32
    %11 = vector.broadcast %cst_5 : f32 to vector<8x8xf32>
    %12 = arith.mulf %10, %11 : vector<8x8xf32>
    %cst_6 = arith.constant dense<0xFF800000> : vector<8xf32>
    %13 = vector.multi_reduction <maximumf>, %12, %cst_6 [1] : vector<8x8xf32> to vector<8xf32>
    %14 = vector.shape_cast %13 : vector<8xf32> to vector<8x1xf32>
    %15 = vector.broadcast %14 : vector<8x1xf32> to vector<8x8xf32>
    %16 = arith.subf %12, %15 : vector<8x8xf32>
    %17 = math.exp %16 : vector<8x8xf32>
    %cst_7 = arith.constant dense<0.000000e+00> : vector<8xf32>
    %18 = vector.multi_reduction <add>, %17, %cst_7 [1] : vector<8x8xf32> to vector<8xf32>
    %19 = vector.shape_cast %18 : vector<8xf32> to vector<8x1xf32>
    %20 = vector.broadcast %19 : vector<8x1xf32> to vector<8x8xf32>
    %21 = arith.divf %17, %20 : vector<8x8xf32>
    %cst_8 = arith.constant dense<0.000000e+00> : vector<8x64xf32>
    %22 = tpu.matmul %21, %9, %cst_8 {dimension_numbers = #tpu.dot_dimension_numbers<[1], [0], [0], [1], [0, 0, 1, 1], [], []>} : vector<8x8xf32>, vector<8x64xf32>, vector<8x64xf32> -> vector<8x64xf32>
    %23 = vector.extract_strided_slice %4 {offsets = [0, 64], sizes = [8, 64], strides = [1, 1]} : vector<8x128xf32> to vector<8x64xf32>
    %24 = vector.extract_strided_slice %5 {offsets = [0, 64], sizes = [8, 64], strides = [1, 1]} : vector<8x128xf32> to vector<8x64xf32>
    %25 = vector.extract_strided_slice %6 {offsets = [0, 64], sizes = [8, 64], strides = [1, 1]} : vector<8x128xf32> to vector<8x64xf32>
    %cst_9 = arith.constant dense<0.000000e+00> : vector<8x8xf32>
    %26 = tpu.matmul %23, %24, %cst_9 {dimension_numbers = #tpu.dot_dimension_numbers<[1], [1], [0], [0], [0, 0, 1, 0], [], []>} : vector<8x64xf32>, vector<8x64xf32>, vector<8x8xf32> -> vector<8x8xf32>
    %cst_10 = arith.constant 1.250000e-01 : f32
    %27 = vector.broadcast %cst_10 : f32 to vector<8x8xf32>
    %28 = arith.mulf %26, %27 : vector<8x8xf32>
    %cst_11 = arith.constant dense<0xFF800000> : vector<8xf32>
    %29 = vector.multi_reduction <maximumf>, %28, %cst_11 [1] : vector<8x8xf32> to vector<8xf32>
    %30 = vector.shape_cast %29 : vector<8xf32> to vector<8x1xf32>
    %31 = vector.broadcast %30 : vector<8x1xf32> to vector<8x8xf32>
    %32 = arith.subf %28, %31 : vector<8x8xf32>
    %33 = math.exp %32 : vector<8x8xf32>
    %cst_12 = arith.constant dense<0.000000e+00> : vector<8xf32>
    %34 = vector.multi_reduction <add>, %33, %cst_12 [1] : vector<8x8xf32> to vector<8xf32>
    %35 = vector.shape_cast %34 : vector<8xf32> to vector<8x1xf32>
    %36 = vector.broadcast %35 : vector<8x1xf32> to vector<8x8xf32>
    %37 = arith.divf %33, %36 : vector<8x8xf32>
    %cst_13 = arith.constant dense<0.000000e+00> : vector<8x64xf32>
    %38 = tpu.matmul %37, %25, %cst_13 {dimension_numbers = #tpu.dot_dimension_numbers<[1], [0], [0], [1], [0, 0, 1, 1], [], []>} : vector<8x8xf32>, vector<8x64xf32>, vector<8x64xf32> -> vector<8x64xf32>
    %39 = tpu.concatenate %22, %38 in 1 : vector<8x64xf32>, vector<8x64xf32> -> vector<8x128xf32>
    %c0_14 = arith.constant 0 : index
    %c0_15 = arith.constant 0 : index
    %40 = vector.load %arg3[%c0_14, %c0_15] : memref<128x128xf32, #tpu.memory_space<vmem>>, vector<128x128xf32>
    %cst_16 = arith.constant dense<0.000000e+00> : vector<8x128xf32>
    %41 = tpu.matmul %39, %40, %cst_16 {dimension_numbers = #tpu.dot_dimension_numbers<[1], [0], [0], [1], [0, 0, 1, 1], [], []>} : vector<8x128xf32>, vector<128x128xf32>, vector<8x128xf32> -> vector<8x128xf32>
    %c0_17 = arith.constant 0 : index
    %c0_18 = arith.constant 0 : index
    %42 = vector.load %arg4[%c0_17, %c0_18] : memref<1x128xf32, #tpu.memory_space<vmem>>, vector<1x128xf32>
    %43 = vector.broadcast %42 : vector<1x128xf32> to vector<8x128xf32>
    %44 = arith.addf %41, %43 : vector<8x128xf32>
    %45 = arith.addf %44, %1 : vector<8x128xf32>
    %cst_19 = arith.constant dense<0.000000e+00> : vector<8xf32>
    %46 = vector.multi_reduction <add>, %45, %cst_19 [1] : vector<8x128xf32> to vector<8xf32>
    %47 = vector.shape_cast %46 : vector<8xf32> to vector<8x1xf32>
    %cst_20 = arith.constant 1.280000e+02 : f32
    %48 = vector.broadcast %cst_20 : f32 to vector<8x1xf32>
    %49 = arith.divf %47, %48 : vector<8x1xf32>
    %50 = vector.broadcast %49 : vector<8x1xf32> to vector<8x128xf32>
    %51 = arith.subf %45, %50 : vector<8x128xf32>
    %52 = arith.mulf %51, %51 : vector<8x128xf32>
    %cst_21 = arith.constant dense<0.000000e+00> : vector<8xf32>
    %53 = vector.multi_reduction <add>, %52, %cst_21 [1] : vector<8x128xf32> to vector<8xf32>
    %54 = vector.shape_cast %53 : vector<8xf32> to vector<8x1xf32>
    %cst_22 = arith.constant 1.280000e+02 : f32
    %55 = vector.broadcast %cst_22 : f32 to vector<8x1xf32>
    %56 = arith.divf %54, %55 : vector<8x1xf32>
    %cst_23 = arith.constant 9.99999974E-6 : f32
    %57 = vector.broadcast %cst_23 : f32 to vector<8x1xf32>
    %58 = arith.addf %56, %57 : vector<8x1xf32>
    %59 = math.rsqrt %58 : vector<8x1xf32>
    %60 = vector.broadcast %59 : vector<8x1xf32> to vector<8x128xf32>
    %61 = arith.mulf %51, %60 : vector<8x128xf32>
    %c0_24 = arith.constant 0 : index
    %c0_25 = arith.constant 0 : index
    %62 = vector.load %arg5[%c0_24, %c0_25] : memref<1x128xf32, #tpu.memory_space<vmem>>, vector<1x128xf32>
    %63 = vector.broadcast %62 : vector<1x128xf32> to vector<8x128xf32>
    %64 = arith.mulf %61, %63 : vector<8x128xf32>
    %c0_26 = arith.constant 0 : index
    %c0_27 = arith.constant 0 : index
    %65 = vector.load %arg6[%c0_26, %c0_27] : memref<1x128xf32, #tpu.memory_space<vmem>>, vector<1x128xf32>
    %66 = vector.broadcast %65 : vector<1x128xf32> to vector<8x128xf32>
    %67 = arith.addf %64, %66 : vector<8x128xf32>
    %c0_28 = arith.constant 0 : index
    %c0_29 = arith.constant 0 : index
    %c0_30 = arith.constant 0 : index
    %68 = vector.load %arg7[%c0_28, %c0_29, %c0_30] : memref<1x8x128xf32, #tpu.memory_space<vmem>>, vector<1x8x128xf32>
    %69 = vector.shape_cast %68 : vector<1x8x128xf32> to vector<8x128xf32>
    %70 = vector.shape_cast %67 : vector<8x128xf32> to vector<1x8x128xf32>
    tpu.vector_store %arg7[%c0_28, %c0_29, %c0_30], %70 {strides = array<i32>} : memref<1x8x128xf32, #tpu.memory_space<vmem>>, vector<1x8x128xf32>,
    return
  }
  func.func @transform_0(%arg0: i32) -> (i32, i32, i32) {
    %c0_i32 = arith.constant 0 : i32
    %c0_i32_0 = arith.constant 0 : i32
    %c0_i32_1 = arith.constant 0 : i32
    return %arg0, %c0_i32, %c0_i32_0 : i32, i32, i32
  }
  func.func @transform_1(%arg0: i32) -> (i32, i32) {
    %c0_i32 = arith.constant 0 : i32
    %c0_i32_0 = arith.constant 0 : i32
    %c0_i32_1 = arith.constant 0 : i32
    return %c0_i32, %c0_i32_0 : i32, i32
  }
  func.func @transform_2(%arg0: i32) -> (i32, i32) {
    %c0_i32 = arith.constant 0 : i32
    %c0_i32_0 = arith.constant 0 : i32
    %c0_i32_1 = arith.constant 0 : i32
    return %c0_i32, %c0_i32_0 : i32, i32
  }
  func.func @transform_3(%arg0: i32) -> (i32, i32) {
    %c0_i32 = arith.constant 0 : i32
    %c0_i32_0 = arith.constant 0 : i32
    %c0_i32_1 = arith.constant 0 : i32
    return %c0_i32, %c0_i32_0 : i32, i32
  }
  func.func @transform_4(%arg0: i32) -> (i32, i32) {
    %c0_i32 = arith.constant 0 : i32
    %c0_i32_0 = arith.constant 0 : i32
    %c0_i32_1 = arith.constant 0 : i32
    return %c0_i32, %c0_i32_0 : i32, i32
  }
  func.func @transform_5(%arg0: i32) -> (i32, i32) {
    %c0_i32 = arith.constant 0 : i32
    %c0_i32_0 = arith.constant 0 : i32
    %c0_i32_1 = arith.constant 0 : i32
    return %c0_i32, %c0_i32_0 : i32, i32
  }
  func.func @transform_6(%arg0: i32) -> (i32, i32, i32) {
    %c0_i32 = arith.constant 0 : i32
    %c0_i32_0 = arith.constant 0 : i32
    %c0_i32_1 = arith.constant 0 : i32
    return %arg0, %c0_i32, %c0_i32_0 : i32, i32, i32
  }
}

</mosaic_0001>

<llo_original>
// kernel: tpu_custom_call.1
$region0: #{tpu_custom_call.1}
  #allocation0 [shape = 'u32[]', space=smem, size = 0x4, offset = 0x4, fixed_abs, tag = 'smem constant byte address 0x4 - core index']
  #allocation1 [shape = 'u32[144,128]{1,0:T(1,128)}', space=vmem, size = 0x12000, scoped, tag = 'internal scratch']
  %s0 = inlined_call_operand.hbm [shape: f32[2,8,128], index: 0, kind: input, shape index: {}]
  %s1 = inlined_call_operand.hbm [shape: f32[128,384], index: 1, kind: input, shape index: {}]
  %s2 = inlined_call_operand.hbm [shape: f32[128,128], index: 2, kind: input, shape index: {}]
  %s3 = inlined_call_operand.vmem [shape: f32[1,128], index: 3, kind: input, shape index: {}]
  %s4 = inlined_call_operand.vmem [shape: f32[1,128], index: 4, kind: input, shape index: {}]
  %s5 = inlined_call_operand.vmem [shape: f32[1,128], index: 5, kind: input, shape index: {}]
  %s6 = inlined_call_operand.hbm [shape: f32[2,8,128], index: 6, kind: output, shape index: {}]
  %s7 = sld [smem:[#allocation0]]
  $region69: #{tpu_custom_call.1} parent=0
    _
  %s9 = ssub.s32 1, %s7
  %s10 = scalar_select 0, %s9, %s7
  $region1: #{tpu_custom_call.1} parent=0
    #allocation2 [shape = 'u8[8192]{0}', space=vmem, size = 0x2000, scoped, tag = 'input window, operand 0']
    #allocation3 [shape = 's32[2]{0}', space=sflag, size = 0x8, scoped, tag = 'scoped memory for tpu_custom_call.1']
    #allocation4 [shape = 's32[2]{0}', space=sflag, size = 0x8, scoped, tag = 'scoped memory for tpu_custom_call.1']
    #allocation5 [shape = 'u8[196608]{0}', space=vmem, size = 0x30000, scoped, tag = 'input window, operand 1, single buffered']
    #allocation6 [shape = 's32[1]{0}', space=sflag, size = 0x4, scoped, tag = 'scoped memory for tpu_custom_call.1']
    #allocation7 [shape = 'u8[65536]{0}', space=vmem, size = 0x10000, scoped, tag = 'input window, operand 2, single buffered']
    #allocation8 [shape = 'u8[8192]{0}', space=vmem, size = 0x2000, scoped, tag = 'output window, operand 0']
    %11 = vsyncpa [#allocation3], 0
    %s12 = scalar_lea.sflag [#allocation3], 1
    %13 = vsyncpa %s12, 0
    %14 = vsyncpa [#allocation6], 0
    %15 = vsyncpa [#allocation4], 0
    %s16 = scalar_lea.sflag [#allocation4], 1
    %17 = vsyncpa %s16, 0
    loop: start=0, step=1, limit=4
    $region2: #{tpu_custom_call.1} parent=1 // loop_pre_header
      _
    $region3: #{tpu_custom_call.1} parent=1 // loop_header
      %s19 = sphi 0, %s23
      %p20 = scmp.ge.s32.totalorder %s19, 4
      %s29 = sphi 0, %s31
      %s32 = sphi 0, %s29
      %s33 = sphi 0, %s32
      %s49 = sphi 0, %s33
      %s53 = sphi 0, %s53
      %s55 = sphi 0, %s53
      %s56 = sphi 0, %s55
      %s70 = sphi 0, %s56
      %s74 = sphi 0, %s74
      %s76 = sphi 0, %s74
      %s77 = sphi 0, %s76
      %s91 = sphi 0, %s77
      %s95 = sphi 0, %s95
      %s97 = sphi 0, %s95
      %s98 = sphi 0, %s97
      %s112 = sphi 0, %s98
      %s116 = sphi 0, %s116
      %s118 = sphi 0, %s116
      %s119 = sphi 0, %s118
      %s133 = sphi 0, %s119
      %s137 = sphi 0, %s137
      %s139 = sphi 0, %s137
      %s140 = sphi 0, %s139
      %s154 = sphi 0, %s140
      %s160 = sphi 0, %s162
      %s163 = sphi 0, %s160
      %s164 = sphi 0, %s163
      %s180 = sphi 0, %s164
    $region4: #{tpu_custom_call.1} parent=1 // loop_header_branch
      %22 = sbr.rel (%p20) target = $region8
    $region5: #{tpu_custom_call.1} parent=1 // loop_body
      %s24 = ssub.s32 %s19, 1
      %s25 = ssub.s32 %s19, 2
      %s26 = sadd.s32 %s19, 1
      %s27 = ssub.s32 %s19, %s26
      %p28 = scmp.eq.s32.totalorder %s27, 0
      %s30 = sadd.s32 %s29, 1
      %s31 = scalar_select %p28, %s29, %s30
      %p34 = pneg %p28
      %p35 = scmp.eq.s32.totalorder %s19, 1
      %p36 = por %p34, %p35
      %p37 = scmp.ne.s32.totalorder %s29, %s32
      %p38 = scmp.eq.s32.totalorder %s19, 0
      %p39 = por %p37, %p38
      %p40 = scmp.ne.s32.totalorder %s29, %s32
      %p41 = scmp.eq.s32.totalorder %s24, 1
      %p42 = por %p40, %p41
      %p43 = scmp.ne.s32.totalorder %s32, %s33
      %p44 = scmp.eq.s32.totalorder %s24, 0
      %p45 = por %p43, %p44
      %p46 = scmp.ne.s32.totalorder %s32, %s33
      %p47 = scmp.eq.s32.totalorder %s25, 1
      %p48 = por %p46, %p47
      %p50 = scmp.ne.s32.totalorder %s33, %s49
      %p51 = scmp.eq.s32.totalorder %s25, 0
      %p52 = por %p50, %p51
      %s54 = sadd.s32 %s53, 1
      %p57 = scmp.eq.s32.totalorder %s19, 1
      %p58 = scmp.ne.s32.totalorder %s53, %s55
      %p59 = scmp.eq.s32.totalorder %s19, 0
      %p60 = por %p58, %p59
      %p61 = scmp.ne.s32.totalorder %s53, %s55
      %p62 = scmp.eq.s32.totalorder %s24, 1
      %p63 = por %p61, %p62
      %p64 = scmp.ne.s32.totalorder %s55, %s56
      %p65 = scmp.eq.s32.totalorder %s24, 0
      %p66 = por %p64, %p65
      %p67 = scmp.ne.s32.totalorder %s55, %s56
      %p68 = scmp.eq.s32.totalorder %s25, 1
      %p69 = por %p67, %p68
      %p71 = scmp.ne.s32.totalorder %s56, %s70
      %p72 = scmp.eq.s32.totalorder %s25, 0
      %p73 = por %p71, %p72
      %s75 = sadd.s32 %s74, 1
      %p78 = scmp.eq.s32.totalorder %s19, 1
      %p79 = scmp.ne.s32.totalorder %s74, %s76
      %p80 = scmp.eq.s32.totalorder %s19, 0
      %p81 = por %p79, %p80
      %p82 = scmp.ne.s32.totalorder %s74, %s76
      %p83 = scmp.eq.s32.totalorder %s24, 1
      %p84 = por %p82, %p83
      %p85 = scmp.ne.s32.totalorder %s76, %s77
      %p86 = scmp.eq.s32.totalorder %s24, 0
      %p87 = por %p85, %p86
      %p88 = scmp.ne.s32.totalorder %s76, %s77
      %p89 = scmp.eq.s32.totalorder %s25, 1
      %p90 = por %p88, %p89
      %p92 = scmp.ne.s32.totalorder %s77, %s91
      %p93 = scmp.eq.s32.totalorder %s25, 0
      %p94 = por %p92, %p93
      %s96 = sadd.s32 %s95, 1
      %p99 = scmp.eq.s32.totalorder %s19, 1
      %p100 = scmp.ne.s32.totalorder %s95, %s97
      %p101 = scmp.eq.s32.totalorder %s19, 0
      %p102 = por %p100, %p101
      %p103 = scmp.ne.s32.totalorder %s95, %s97
      %p104 = scmp.eq.s32.totalorder %s24, 1
      %p105 = por %p103, %p104
      %p106 = scmp.ne.s32.totalorder %s97, %s98
      %p107 = scmp.eq.s32.totalorder %s24, 0
      %p108 = por %p106, %p107
      %p109 = scmp.ne.s32.totalorder %s97, %s98
      %p110 = scmp.eq.s32.totalorder %s25, 1
      %p111 = por %p109, %p110
      %p113 = scmp.ne.s32.totalorder %s98, %s112
      %p114 = scmp.eq.s32.totalorder %s25, 0
      %p115 = por %p113, %p114
      %s117 = sadd.s32 %s116, 1
      %p120 = scmp.eq.s32.totalorder %s19, 1
      %p121 = scmp.ne.s32.totalorder %s116, %s118
      %p122 = scmp.eq.s32.totalorder %s19, 0
      %p123 = por %p121, %p122
      %p124 = scmp.ne.s32.totalorder %s116, %s118
      %p125 = scmp.eq.s32.totalorder %s24, 1
      %p126 = por %p124, %p125
      %p127 = scmp.ne.s32.totalorder %s118, %s119
      %p128 = scmp.eq.s32.totalorder %s24, 0
      %p129 = por %p127, %p128
      %p130 = scmp.ne.s32.totalorder %s118, %s119
      %p131 = scmp.eq.s32.totalorder %s25, 1
      %p132 = por %p130, %p131
      %p134 = scmp.ne.s32.totalorder %s119, %s133
      %p135 = scmp.eq.s32.totalorder %s25, 0
      %p136 = por %p134, %p135
      %s138 = sadd.s32 %s137, 1
      %p141 = scmp.eq.s32.totalorder %s19, 1
      %p142 = scmp.ne.s32.totalorder %s137, %s139
      %p143 = scmp.eq.s32.totalorder %s19, 0
      %p144 = por %p142, %p143
      %p145 = scmp.ne.s32.totalorder %s137, %s139
      %p146 = scmp.eq.s32.totalorder %s24, 1
      %p147 = por %p145, %p146
      %p148 = scmp.ne.s32.totalorder %s139, %s140
      %p149 = scmp.eq.s32.totalorder %s24, 0
      %p150 = por %p148, %p149
      %p151 = scmp.ne.s32.totalorder %s139, %s140
      %p152 = scmp.eq.s32.totalorder %s25, 1
      %p153 = por %p151, %p152
      %p155 = scmp.ne.s32.totalorder %s140, %s154
      %p156 = scmp.eq.s32.totalorder %s25, 0
      %p157 = por %p155, %p156
      %s158 = ssub.s32 %s19, %s26
      %p159 = scmp.eq.s32.totalorder %s158, 0
      %s161 = sadd.s32 %s160, 1
      %s162 = scalar_select %p159, %s160, %s161
      %p165 = pneg %p159
      %p166 = scmp.eq.s32.totalorder %s19, 1
      %p167 = por %p165, %p166
      %p168 = scmp.ne.s32.totalorder %s160, %s163
      %p169 = scmp.eq.s32.totalorder %s19, 0
      %p170 = por %p168, %p169
      %p171 = scmp.ne.s32.totalorder %s160, %s163
      %p172 = scmp.eq.s32.totalorder %s24, 1
      %p173 = por %p171, %p172
      %p174 = scmp.ne.s32.totalorder %s163, %s164
      %p175 = scmp.eq.s32.totalorder %s24, 0
      %p176 = por %p174, %p175
      %p177 = scmp.ne.s32.totalorder %s163, %s164
      %p178 = scmp.eq.s32.totalorder %s25, 1
      %p179 = por %p177, %p178
      %p181 = scmp.ne.s32.totalorder %s164, %s180
      %p182 = scmp.eq.s32.totalorder %s25, 0
      %p183 = por %p181, %p182
      %p184 = scmp.le.s32.totalorder 1, %s19
      %p185 = scmp.lt.s32.totalorder %s19, 3
      %p186 = pnand %p184, %p185
      %p187 = pneg %p186
      // Predicated region
      $region9: #{tpu_custom_call.1} parent=5 // pred_check
        _
      $region10: #{tpu_custom_call.1} parent=5 // pred_check_branch
        %189 = sbr.rel (%p186) target = $region12
      $region11: #{tpu_custom_call.1} parent=5 // pred_region
        %s190 = ssub.s32 %s19, 1
        // Predicated region
        $region13: #{tpu_custom_call.1} parent=11 // pred_check
          %p191 = pneg %p66
        $region14: #{tpu_custom_call.1} parent=11 // pred_check_branch
          %193 = sbr.rel (%p191) target = $region16
        $region15: #{tpu_custom_call.1} parent=11 // pred_region
          %s195 = ssub.s32 6144, 6144
          %196 = vsyncadd [#allocation6], %s195
          %s197 = sshll.u32 [#allocation5], 4
          %s198 = int_to_ptr.vmem [resolvable:$true] %s197
          %203 = dma.hbm_to_vmem [thread:$0]  %s1, 6144, %s198, [#allocation6], 384, 384, 24
        $region16: #{tpu_custom_call.1} parent=11 // pred_fallthru
          _
        // Predicated region
        $region17: #{tpu_custom_call.1} parent=11 // pred_check
          %p204 = pneg %p87
        $region18: #{tpu_custom_call.1} parent=11 // pred_check_branch
          %206 = sbr.rel (%p204) target = $region20
        $region19: #{tpu_custom_call.1} parent=11 // pred_region
          %s208 = ssub.s32 2048, 2048
          %209 = vsyncadd [#allocation6], %s208
          %s210 = sshll.u32 [#allocation7], 4
          %s211 = int_to_ptr.vmem [resolvable:$true] %s210
          %216 = dma.hbm_to_vmem [thread:$0]  %s2, 2048, %s211, [#allocation6], 128, 128, 8
        $region20: #{tpu_custom_call.1} parent=11 // pred_fallthru
          _
        // Predicated region
        $region21: #{tpu_custom_call.1} parent=11 // pred_check
          %p217 = pneg %p108
        $region22: #{tpu_custom_call.1} parent=11 // pred_check_branch
          %219 = sbr.rel (%p217) target = $region24
        $region23: #{tpu_custom_call.1} parent=11 // pred_region
          _
        $region24: #{tpu_custom_call.1} parent=11 // pred_fallthru
          _
        // Predicated region
        $region25: #{tpu_custom_call.1} parent=11 // pred_check
          %p220 = pneg %p129
        $region26: #{tpu_custom_call.1} parent=11 // pred_check_branch
          %222 = sbr.rel (%p220) target = $region28
        $region27: #{tpu_custom_call.1} parent=11 // pred_region
          _
        $region28: #{tpu_custom_call.1} parent=11 // pred_fallthru
          _
        // Predicated region
        $region29: #{tpu_custom_call.1} parent=11 // pred_check
          %p223 = pneg %p150
        $region30: #{tpu_custom_call.1} parent=11 // pred_check_branch
          %225 = sbr.rel (%p223) target = $region32
        $region31: #{tpu_custom_call.1} parent=11 // pred_region
          _
        $region32: #{tpu_custom_call.1} parent=11 // pred_fallthru
          _
      $region12: #{tpu_custom_call.1} parent=5 // pred_fallthru
        _
      %p226 = scmp.lt.s32.totalorder %s19, 2
      // Predicated region
      $region33: #{tpu_custom_call.1} parent=5 // pred_check
        %p227 = pneg %p226
      $region34: #{tpu_custom_call.1} parent=5 // pred_check_branch
        %229 = sbr.rel (%p227) target = $region36
      $region35: #{tpu_custom_call.1} parent=5 // pred_region
        // Predicated region
        $region37: #{tpu_custom_call.1} parent=35 // pred_check
          %p230 = pneg %p39
        $region38: #{tpu_custom_call.1} parent=35 // pred_check_branch
          %232 = sbr.rel (%p230) target = $region40
        $region39: #{tpu_custom_call.1} parent=35 // pred_region
          %s233 = sand.u32 %s29, 1
          %s234 = scalar_lea.sflag [#allocation3], %s233
          %s235 = sand.u32 %s29, 1
          %s236 = smul.addr %s235, 8
          %s237 = scalar_lea.vmem [#allocation2], %s236
          %s239 = ssub.s32 128, 128
          %240 = vsyncadd %s234, %s239
          %s241 = smul.addr %s19, 128
          %s242 = scalar_lea.hbm %s0, %s241
          %s244 = sshll.u32 %s237, 4
          %s245 = int_to_ptr.vmem [resolvable:$true] %s244
          %247 = dma.hbm_to_vmem [thread:$0]  %s242, 128, %s245, %s234
        $region40: #{tpu_custom_call.1} parent=35 // pred_fallthru
          _
      $region36: #{tpu_custom_call.1} parent=5 // pred_fallthru
        _
      %p248 = scmp.le.s32.totalorder 1, %s19
      %p249 = scmp.lt.s32.totalorder %s19, 3
      %p250 = pnand %p248, %p249
      %p251 = pneg %p250
      // Predicated region
      $region41: #{tpu_custom_call.1} parent=5 // pred_check
        _
      $region42: #{tpu_custom_call.1} parent=5 // pred_check_branch
        %253 = sbr.rel (%p250) target = $region44
      $region43: #{tpu_custom_call.1} parent=5 // pred_region
        %s254 = ssub.s32 %s19, 1
        %s255 = sand.u32 %s32, 1
        %s256 = scalar_lea.sflag [#allocation3], %s255
        %s257 = sand.u32 %s32, 1
        %s258 = smul.addr %s257, 8
        %s259 = scalar_lea.vmem [#allocation2], %s258
        // Predicated region
        $region45: #{tpu_custom_call.1} parent=43 // pred_check
          %p260 = pneg %p45
        $region46: #{tpu_custom_call.1} parent=43 // pred_check_branch
          %262 = sbr.rel (%p260) target = $region48
        $region47: #{tpu_custom_call.1} parent=43 // pred_region
          %263 = dma.done %s256, 128
        $region48: #{tpu_custom_call.1} parent=43 // pred_fallthru
          _
        // Predicated region
        $region49: #{tpu_custom_call.1} parent=43 // pred_check
          %p264 = pneg %p66
        $region50: #{tpu_custom_call.1} parent=43 // pred_check_branch
          %266 = sbr.rel (%p264) target = $region52
        $region51: #{tpu_custom_call.1} parent=43 // pred_region
          %267 = dma.done [#allocation6], 6144
        $region52: #{tpu_custom_call.1} parent=43 // pred_fallthru
          _
        // Predicated region
        $region53: #{tpu_custom_call.1} parent=43 // pred_check
          %p268 = pneg %p87
        $region54: #{tpu_custom_call.1} parent=43 // pred_check_branch
          %270 = sbr.rel (%p268) target = $region56
        $region55: #{tpu_custom_call.1} parent=43 // pred_region
          %271 = dma.done [#allocation6], 2048
        $region56: #{tpu_custom_call.1} parent=43 // pred_fallthru
          _
        %s272 = sand.u32 %s32, 1
        %s273 = scalar_lea.sflag [#allocation3], %s272
        %s274 = sand.u32 %s32, 1
        %s275 = smul.addr %s274, 8
        %s276 = scalar_lea.vmem [#allocation2], %s275
        %p277 = pneg %p45
        %p278 = pneg %p42
        %p279 = pneg %p66
        %p280 = pneg %p63
        %p281 = pneg %p87
        %p282 = pneg %p84
        %p283 = pneg %p108
        %p284 = pneg %p105
        %p285 = pneg %p129
        %p286 = pneg %p126
        %p287 = pneg %p150
        %p288 = pneg %p147
        %p289 = pneg %p176
        %p290 = pneg %p173
        %s291 = sand.u32 %s163, 1
        %s292 = scalar_lea.sflag [#allocation4], %s291
        %s293 = sand.u32 %s163, 1
        %s294 = smul.addr %s293, 8
        %s295 = scalar_lea.vmem [#allocation8], %s294
        %v296 = vld [vmem:[%s259] sm:$0xff]
        %v297 = vld [vmem:[#allocation5] sm:$0xff]
        %v298 = vld [vmem:[#allocation5 + $0x8] sm:$0xff]
        %v299 = vld [vmem:[#allocation5 + $0x10] sm:$0xff]
        %v300 = vld [vmem:[#allocation5 + $0x18] sm:$0xff]
        %v301 = vld [vmem:[#allocation5 + $0x20] sm:$0xff]
        %v302 = vld [vmem:[#allocation5 + $0x28] sm:$0xff]
        %v303 = vld [vmem:[#allocation5 + $0x30] sm:$0xff]
        %v304 = vld [vmem:[#allocation5 + $0x38] sm:$0xff]
        %v305 = vld [vmem:[#allocation5 + $0x40] sm:$0xff]
        %v306 = vld [vmem:[#allocation5 + $0x48] sm:$0xff]
        %v307 = vld [vmem:[#allocation5 + $0x50] sm:$0xff]
        %v308 = vld [vmem:[#allocation5 + $0x58] sm:$0xff]
        %v309 = vld [vmem:[#allocation5 + $0x60] sm:$0xff]
        %v310 = vld [vmem:[#allocation5 + $0x68] sm:$0xff]
        %v311 = vld [vmem:[#allocation5 + $0x70] sm:$0xff]
        %v312 = vld [vmem:[#allocation5 + $0x78] sm:$0xff]
        %v313 = vld [vmem:[#allocation5 + $0x80] sm:$0xff]
        %v314 = vld [vmem:[#allocation5 + $0x88] sm:$0xff]
        %v315 = vld [vmem:[#allocation5 + $0x90] sm:$0xff]
        %v316 = vld [vmem:[#allocation5 + $0x98] sm:$0xff]
        %v317 = vld [vmem:[#allocation5 + $0xa0] sm:$0xff]
        %v318 = vld [vmem:[#allocation5 + $0xa8] sm:$0xff]
        %v319 = vld [vmem:[#allocation5 + $0xb0] sm:$0xff]
        %v320 = vld [vmem:[#allocation5 + $0xb8] sm:$0xff]
        %v321 = vld [vmem:[#allocation5 + $0xc0] sm:$0xff]
        %v322 = vld [vmem:[#allocation5 + $0xc8] sm:$0xff]
        %v323 = vld [vmem:[#allocation5 + $0xd0] sm:$0xff]
        %v324 = vld [vmem:[#allocation5 + $0xd8] sm:$0xff]
        %v325 = vld [vmem:[#allocation5 + $0xe0] sm:$0xff]
        %v326 = vld [vmem:[#allocation5 + $0xe8] sm:$0xff]
        %v327 = vld [vmem:[#allocation5 + $0xf0] sm:$0xff]
        %v328 = vld [vmem:[#allocation5 + $0xf8] sm:$0xff]
        %v329 = vld [vmem:[#allocation5 + $0x100] sm:$0xff]
        %v330 = vld [vmem:[#allocation5 + $0x108] sm:$0xff]
        %v331 = vld [vmem:[#allocation5 + $0x110] sm:$0xff]
        %v332 = vld [vmem:[#allocation5 + $0x118] sm:$0xff]
        %v333 = vld [vmem:[#allocation5 + $0x120] sm:$0xff]
        %v334 = vld [vmem:[#allocation5 + $0x128] sm:$0xff]
        %v335 = vld [vmem:[#allocation5 + $0x130] sm:$0xff]
        %v336 = vld [vmem:[#allocation5 + $0x138] sm:$0xff]
        %v337 = vld [vmem:[#allocation5 + $0x140] sm:$0xff]
        %v338 = vld [vmem:[#allocation5 + $0x148] sm:$0xff]
        %v339 = vld [vmem:[#allocation5 + $0x150] sm:$0xff]
        %v340 = vld [vmem:[#allocation5 + $0x158] sm:$0xff]
        %v341 = vld [vmem:[#allocation5 + $0x160] sm:$0xff]
        %v342 = vld [vmem:[#allocation5 + $0x168] sm:$0xff]
        %v343 = vld [vmem:[#allocation5 + $0x170] sm:$0xff]
        %v344 = vld [vmem:[#allocation5 + $0x178] sm:$0xff]
        %345 = vmatprep.subr.mxu0 %v298
        %346 = vmatpush1.msra.mxu0 %v297
        %347 = vmatprep.subr.mxu0 %v301
        %348 = vmatpush1.msra.mxu0 %v300
        %349 = vmatprep.subr.mxu0 %v304
        %350 = vmatpush1.msra.mxu0 %v303
        %351 = vmatprep.subr.mxu0 %v307
        %352 = vmatpush1.msra.mxu0 %v306
        %353 = vmatprep.subr.mxu0 %v310
        %354 = vmatpush1.msra.mxu0 %v309
        %355 = vmatprep.subr.mxu0 %v313
        %356 = vmatpush1.msra.mxu0 %v312
        %357 = vmatprep.subr.mxu0 %v316
        %358 = vmatpush1.msra.mxu0 %v315
        %359 = vmatprep.subr.mxu0 %v319
        %360 = vmatpush1.msra.mxu0 %v318
        %361 = vmatprep.subr.mxu0 %v322
        %362 = vmatpush1.msra.mxu0 %v321
        %363 = vmatprep.subr.mxu0 %v325
        %364 = vmatpush1.msra.mxu0 %v324
        %365 = vmatprep.subr.mxu0 %v328
        %366 = vmatpush1.msra.mxu0 %v327
        %367 = vmatprep.subr.mxu0 %v331
        %368 = vmatpush1.msra.mxu0 %v330
        %369 = vmatprep.subr.mxu0 %v334
        %370 = vmatpush1.msra.mxu0 %v333
        %371 = vmatprep.subr.mxu0 %v337
        %372 = vmatpush1.msra.mxu0 %v336
        %373 = vmatprep.subr.mxu0 %v340
        %374 = vmatpush1.msra.mxu0 %v339
        %375 = vmatprep.subr.mxu0 %v343
        %376 = vmatpush1.msra.mxu0 %v342
        %377 = vmatprep.subr.mxu0 0.0
        %378 = vmatpush1.msra.mxu0 0.0
        %379 = vmatprep.subr.mxu0 0.0
        %380 = vmatpush1.msra.mxu0 0.0
        %381 = vmatprep.subr.mxu0 0.0
        %382 = vmatpush1.msra.mxu0 0.0
        %383 = vmatprep.subr.mxu0 0.0
        %384 = vmatpush1.msra.mxu0 0.0
        %385 = vmatprep.subr.mxu0 0.0
        %386 = vmatpush1.msra.mxu0 0.0
        %387 = vmatprep.subr.mxu0 0.0
        %388 = vmatpush1.msra.mxu0 0.0
        %389 = vmatprep.subr.mxu0 0.0
        %390 = vmatpush1.msra.mxu0 0.0
        %391 = vmatprep.subr.mxu0 0.0
        %392 = vmatpush1.msra.mxu0 0.0
        %393 = vmatprep.subr.mxu0 0.0
        %394 = vmatpush1.msra.mxu0 0.0
        %395 = vmatprep.subr.mxu0 0.0
        %396 = vmatpush1.msra.mxu0 0.0
        %397 = vmatprep.subr.mxu0 0.0
        %398 = vmatpush1.msra.mxu0 0.0
        %399 = vmatprep.subr.mxu0 0.0
        %400 = vmatpush1.msra.mxu0 0.0
        %401 = vmatprep.subr.mxu0 0.0
        %402 = vmatpush1.msra.mxu0 0.0
        %403 = vmatprep.subr.mxu0 0.0
        %404 = vmatpush1.msra.mxu0 0.0
        %405 = vmatprep.subr.mxu0 0.0
        %406 = vmatpush1.msra.mxu0 0.0
        %407 = vmatprep.subr.mxu0 0.0
        %408 = vmatpush1.msra.mxu0 0.0
        %409 = vmatprep.mubr.f32.mxu0 0.0
        %410 = vmatmul.mubr.f32.gmra.mrb[0].mxu0 %v296
        %v411 = vpop.f32.mrb[0].mxu0
        %v412 = vadd.f32 0.0, %v411
        %v413 = vpop.f32.mrb[0].mxu0
        %v414 = vadd.f32 0.0, %v413
        %415 = vdwg.mxu0
        %416 = vmatprep.subr.mxu0 0.0
        %417 = vmatpush1.msra.mxu0 %v299
        %418 = vmatprep.subr.mxu0 0.0
        %419 = vmatpush1.msra.mxu0 %v302
        %420 = vmatprep.subr.mxu0 0.0
        %421 = vmatpush1.msra.mxu0 %v305
        %422 = vmatprep.subr.mxu0 0.0
        %423 = vmatpush1.msra.mxu0 %v308
        %424 = vmatprep.subr.mxu0 0.0
        %425 = vmatpush1.msra.mxu0 %v311
        %426 = vmatprep.subr.mxu0 0.0
        %427 = vmatpush1.msra.mxu0 %v314
        %428 = vmatprep.subr.mxu0 0.0
        %429 = vmatpush1.msra.mxu0 %v317
        %430 = vmatprep.subr.mxu0 0.0
        %431 = vmatpush1.msra.mxu0 %v320
        %432 = vmatprep.subr.mxu0 0.0
        %433 = vmatpush1.msra.mxu0 %v323
        %434 = vmatprep.subr.mxu0 0.0
        %435 = vmatpush1.msra.mxu0 %v326
        %436 = vmatprep.subr.mxu0 0.0
        %437 = vmatpush1.msra.mxu0 %v329
        %438 = vmatprep.subr.mxu0 0.0
        %439 = vmatpush1.msra.mxu0 %v332
        %440 = vmatprep.subr.mxu0 0.0
        %441 = vmatpush1.msra.mxu0 %v335
        %442 = vmatprep.subr.mxu0 0.0
        %443 = vmatpush1.msra.mxu0 %v338
        %444 = vmatprep.subr.mxu0 0.0
        %445 = vmatpush1.msra.mxu0 %v341
        %446 = vmatprep.subr.mxu0 0.0
        %447 = vmatpush1.msra.mxu0 %v344
        %448 = vmatprep.subr.mxu0 0.0
        %449 = vmatpush1.msra.mxu0 0.0
        %450 = vmatprep.subr.mxu0 0.0
        %451 = vmatpush1.msra.mxu0 0.0
        %452 = vmatprep.subr.mxu0 0.0
        %453 = vmatpush1.msra.mxu0 0.0
        %454 = vmatprep.subr.mxu0 0.0
        %455 = vmatpush1.msra.mxu0 0.0
        %456 = vmatprep.subr.mxu0 0.0
        %457 = vmatpush1.msra.mxu0 0.0
        %458 = vmatprep.subr.mxu0 0.0
        %459 = vmatpush1.msra.mxu0 0.0
        %460 = vmatprep.subr.mxu0 0.0
        %461 = vmatpush1.msra.mxu0 0.0
        %462 = vmatprep.subr.mxu0 0.0
        %463 = vmatpush1.msra.mxu0 0.0
        %464 = vmatprep.subr.mxu0 0.0
        %465 = vmatpush1.msra.mxu0 0.0
        %466 = vmatprep.subr.mxu0 0.0
        %467 = vmatpush1.msra.mxu0 0.0
        %468 = vmatprep.subr.mxu0 0.0
        %469 = vmatpush1.msra.mxu0 0.0
        %470 = vmatprep.subr.mxu0 0.0
        %471 = vmatpush1.msra.mxu0 0.0
        %472 = vmatprep.subr.mxu0 0.0
        %473 = vmatpush1.msra.mxu0 0.0
        %474 = vmatprep.subr.mxu0 0.0
        %475 = vmatpush1.msra.mxu0 0.0
        %476 = vmatprep.subr.mxu0 0.0
        %477 = vmatpush1.msra.mxu0 0.0
        %478 = vmatprep.subr.mxu0 0.0
        %479 = vmatpush1.msra.mxu0 0.0
        %480 = vmatprep.mubr.f32.mxu0 0.0
        %481 = vmatmul.mubr.f32.gmra.mrb[0].mxu0 %v296
        %v482 = vpop.f32.mrb[0].mxu0
        %v483 = vadd.f32 0.0, %v482
        %v484 = vpop.f32.mrb[0].mxu0
        %485 = vdwg.mxu0
        %vm486 = vcmask 523264
        %v488 = vsel %vm486, %v412, 0
        %v491 = vsel %vm486, %v414, 0
        %493 = vmatprep.subr.mxu0 0.0
        %494 = vmatpush1.xpose.msra.mxu0 %v491
        %495 = vmatprep.subr.mxu0 0.0
        %496 = vmatpush1.xpose.msra.mxu0 0.0
        %497 = vmatprep.subr.mxu0 0.0
        %498 = vmatpush1.xpose.msra.mxu0 0.0
        %499 = vmatprep.subr.mxu0 0.0
        %500 = vmatpush1.xpose.msra.mxu0 0.0
        %501 = vmatprep.subr.mxu0 0.0
        %502 = vmatpush1.xpose.msra.mxu0 0.0
        %503 = vmatprep.subr.mxu0 0.0
        %504 = vmatpush1.xpose.msra.mxu0 0.0
        %505 = vmatprep.subr.mxu0 0.0
        %506 = vmatpush1.xpose.msra.mxu0 0.0
        %507 = vmatprep.subr.mxu0 0.0
        %508 = vmatpush1.xpose.msra.mxu0 0.0
        %509 = vmatprep.subr.mxu0 0.0
        %510 = vmatpush1.xpose.msra.mxu0 0.0
        %511 = vmatprep.subr.mxu0 0.0
        %512 = vmatpush1.xpose.msra.mxu0 0.0
        %513 = vmatprep.subr.mxu0 0.0
        %514 = vmatpush1.xpose.msra.mxu0 0.0
        %515 = vmatprep.subr.mxu0 0.0
        %516 = vmatpush1.xpose.msra.mxu0 0.0
        %517 = vmatprep.subr.mxu0 0.0
        %518 = vmatpush1.xpose.msra.mxu0 0.0
        %519 = vmatprep.subr.mxu0 0.0
        %520 = vmatpush1.xpose.msra.mxu0 0.0
        %521 = vmatprep.subr.mxu0 0.0
        %522 = vmatpush1.xpose.msra.mxu0 0.0
        %523 = vmatprep.subr.mxu0 0.0
        %524 = vmatpush1.xpose.msra.mxu0 0.0
        %525 = vmatprep.subr.mxu0 0.0
        %526 = vmatpush1.xpose.msra.mxu0 0.0
        %527 = vmatprep.subr.mxu0 0.0
        %528 = vmatpush1.xpose.msra.mxu0 0.0
        %529 = vmatprep.subr.mxu0 0.0
        %530 = vmatpush1.xpose.msra.mxu0 0.0
        %531 = vmatprep.subr.mxu0 0.0
        %532 = vmatpush1.xpose.msra.mxu0 0.0
        %533 = vmatprep.subr.mxu0 0.0
        %534 = vmatpush1.xpose.msra.mxu0 0.0
        %535 = vmatprep.subr.mxu0 0.0
        %536 = vmatpush1.xpose.msra.mxu0 0.0
        %537 = vmatprep.subr.mxu0 0.0
        %538 = vmatpush1.xpose.msra.mxu0 0.0
        %539 = vmatprep.subr.mxu0 0.0
        %540 = vmatpush1.xpose.msra.mxu0 0.0
        %541 = vmatprep.subr.mxu0 0.0
        %542 = vmatpush1.xpose.msra.mxu0 0.0
        %543 = vmatprep.subr.mxu0 0.0
        %544 = vmatpush1.xpose.msra.mxu0 0.0
        %545 = vmatprep.subr.mxu0 0.0
        %546 = vmatpush1.xpose.msra.mxu0 0.0
        %547 = vmatprep.subr.mxu0 0.0
        %548 = vmatpush1.xpose.msra.mxu0 0.0
        %549 = vmatprep.subr.mxu0 0.0
        %550 = vmatpush1.xpose.msra.mxu0 0.0
        %551 = vmatprep.subr.mxu0 0.0
        %552 = vmatpush1.xpose.msra.mxu0 0.0
        %553 = vmatprep.subr.mxu0 0.0
        %554 = vmatpush1.xpose.msra.mxu0 0.0
        %555 = vmatprep.subr.mxu0 0.0
        %556 = vmatpush1.xpose.msra.mxu0 0.0
        %557 = vmatprep.mubr.f32.mxu0 0.0
        %558 = vmatmul.mubr.f32.gmra.mrb[0].mxu0 %v488
        %v559 = vpop.f32.mrb[0].mxu0
        %v560 = vadd.f32 0.0, %v559
        %v561 = vpop.f32.mrb[0].mxu0
        %562 = vdwg.mxu0
        %v563 = vmul.f32 %v560, 0.125
        %vm564 = vcmask 64512
        %v565 = vsel %vm564, %v563, -inf
        %566 = vmax.xlane.f32.xlu0 %v565
        %v567 = vpop.xlane.xlu0 %566
        %v568 = vsub.f32 %v563, %v567
        %v569 = vmul.f32 %v568, 1.442695
        %v570 = vpow.pop %v569
        %v571 = vsel %vm564, %v570, 0.0
        %572 = vadd.xlane.f32.xlu0 %v571
        %v573 = vpop.xlane.xlu0 %572
        %v574 = vrcp.pop %v573
        %v575 = vmul.f32 %v570, %v574
        %v577 = vsel %vm564, %v575, 0
        %579 = vmatprep.subr.mxu0 0.0
        %580 = vmatpush1.msra.mxu0 %v483
        %581 = vmatprep.subr.mxu0 0.0
        %582 = vmatpush1.msra.mxu0 0.0
        %583 = vmatprep.subr.mxu0 0.0
        %584 = vmatpush1.msra.mxu0 0.0
        %585 = vmatprep.subr.mxu0 0.0
        %586 = vmatpush1.msra.mxu0 0.0
        %587 = vmatprep.subr.mxu0 0.0
        %588 = vmatpush1.msra.mxu0 0.0
        %589 = vmatprep.subr.mxu0 0.0
        %590 = vmatpush1.msra.mxu0 0.0
        %591 = vmatprep.subr.mxu0 0.0
        %592 = vmatpush1.msra.mxu0 0.0
        %593 = vmatprep.subr.mxu0 0.0
        %594 = vmatpush1.msra.mxu0 0.0
        %595 = vmatprep.subr.mxu0 0.0
        %596 = vmatpush1.msra.mxu0 0.0
        %597 = vmatprep.subr.mxu0 0.0
        %598 = vmatpush1.msra.mxu0 0.0
        %599 = vmatprep.subr.mxu0 0.0
        %600 = vmatpush1.msra.mxu0 0.0
        %601 = vmatprep.subr.mxu0 0.0
        %602 = vmatpush1.msra.mxu0 0.0
        %603 = vmatprep.subr.mxu0 0.0
        %604 = vmatpush1.msra.mxu0 0.0
        %605 = vmatprep.subr.mxu0 0.0
        %606 = vmatpush1.msra.mxu0 0.0
        %607 = vmatprep.subr.mxu0 0.0
        %608 = vmatpush1.msra.mxu0 0.0
        %609 = vmatprep.subr.mxu0 0.0
        %610 = vmatpush1.msra.mxu0 0.0
        %611 = vmatprep.subr.mxu0 0.0
        %612 = vmatpush1.msra.mxu0 0.0
        %613 = vmatprep.subr.mxu0 0.0
        %614 = vmatpush1.msra.mxu0 0.0
        %615 = vmatprep.subr.mxu0 0.0
        %616 = vmatpush1.msra.mxu0 0.0
        %617 = vmatprep.subr.mxu0 0.0
        %618 = vmatpush1.msra.mxu0 0.0
        %619 = vmatprep.subr.mxu0 0.0
        %620 = vmatpush1.msra.mxu0 0.0
        %621 = vmatprep.subr.mxu0 0.0
        %622 = vmatpush1.msra.mxu0 0.0
        %623 = vmatprep.subr.mxu0 0.0
        %624 = vmatpush1.msra.mxu0 0.0
        %625 = vmatprep.subr.mxu0 0.0
        %626 = vmatpush1.msra.mxu0 0.0
        %627 = vmatprep.subr.mxu0 0.0
        %628 = vmatpush1.msra.mxu0 0.0
        %629 = vmatprep.subr.mxu0 0.0
        %630 = vmatpush1.msra.mxu0 0.0
        %631 = vmatprep.subr.mxu0 0.0
        %632 = vmatpush1.msra.mxu0 0.0
        %633 = vmatprep.subr.mxu0 0.0
        %634 = vmatpush1.msra.mxu0 0.0
        %635 = vmatprep.subr.mxu0 0.0
        %636 = vmatpush1.msra.mxu0 0.0
        %637 = vmatprep.subr.mxu0 0.0
        %638 = vmatpush1.msra.mxu0 0.0
        %639 = vmatprep.subr.mxu0 0.0
        %640 = vmatpush1.msra.mxu0 0.0
        %641 = vmatprep.subr.mxu0 0.0
        %642 = vmatpush1.msra.mxu0 0.0
        %643 = vmatprep.mubr.f32.mxu0 0.0
        %644 = vmatmul.mubr.f32.gmra.mrb[0].mxu0 %v577
        %v645 = vpop.f32.mrb[0].mxu0
        %v646 = vadd.f32 0.0, %v645
        %v647 = vpop.f32.mrb[0].mxu0
        %648 = vdwg.mxu0
        %649 = vrot.lane.b32.xlu0 %v412, 64
        %v650 = vpop.permute.xlu0 %649
        %651 = vrot.lane.b32.xlu0 %v414, 64
        %v652 = vpop.permute.xlu0 %651
        %v653 = vsel %vm486, %v650, 0
        %v655 = vsel %vm486, %v652, 0
        %657 = vmatprep.subr.mxu0 0.0
        %658 = vmatpush1.xpose.msra.mxu0 %v655
        %659 = vmatprep.subr.mxu0 0.0
        %660 = vmatpush1.xpose.msra.mxu0 0.0
        %661 = vmatprep.subr.mxu0 0.0
        %662 = vmatpush1.xpose.msra.mxu0 0.0
        %663 = vmatprep.subr.mxu0 0.0
        %664 = vmatpush1.xpose.msra.mxu0 0.0
        %665 = vmatprep.subr.mxu0 0.0
        %666 = vmatpush1.xpose.msra.mxu0 0.0
        %667 = vmatprep.subr.mxu0 0.0
        %668 = vmatpush1.xpose.msra.mxu0 0.0
        %669 = vmatprep.subr.mxu0 0.0
        %670 = vmatpush1.xpose.msra.mxu0 0.0
        %671 = vmatprep.subr.mxu0 0.0
        %672 = vmatpush1.xpose.msra.mxu0 0.0
        %673 = vmatprep.subr.mxu0 0.0
        %674 = vmatpush1.xpose.msra.mxu0 0.0
        %675 = vmatprep.subr.mxu0 0.0
        %676 = vmatpush1.xpose.msra.mxu0 0.0
        %677 = vmatprep.subr.mxu0 0.0
        %678 = vmatpush1.xpose.msra.mxu0 0.0
        %679 = vmatprep.subr.mxu0 0.0
        %680 = vmatpush1.xpose.msra.mxu0 0.0
        %681 = vmatprep.subr.mxu0 0.0
        %682 = vmatpush1.xpose.msra.mxu0 0.0
        %683 = vmatprep.subr.mxu0 0.0
        %684 = vmatpush1.xpose.msra.mxu0 0.0
        %685 = vmatprep.subr.mxu0 0.0
        %686 = vmatpush1.xpose.msra.mxu0 0.0
        %687 = vmatprep.subr.mxu0 0.0
        %688 = vmatpush1.xpose.msra.mxu0 0.0
        %689 = vmatprep.subr.mxu0 0.0
        %690 = vmatpush1.xpose.msra.mxu0 0.0
        %691 = vmatprep.subr.mxu0 0.0
        %692 = vmatpush1.xpose.msra.mxu0 0.0
        %693 = vmatprep.subr.mxu0 0.0
        %694 = vmatpush1.xpose.msra.mxu0 0.0
        %695 = vmatprep.subr.mxu0 0.0
        %696 = vmatpush1.xpose.msra.mxu0 0.0
        %697 = vmatprep.subr.mxu0 0.0
        %698 = vmatpush1.xpose.msra.mxu0 0.0
        %699 = vmatprep.subr.mxu0 0.0
        %700 = vmatpush1.xpose.msra.mxu0 0.0
        %701 = vmatprep.subr.mxu0 0.0
        %702 = vmatpush1.xpose.msra.mxu0 0.0
        %703 = vmatprep.subr.mxu0 0.0
        %704 = vmatpush1.xpose.msra.mxu0 0.0
        %705 = vmatprep.subr.mxu0 0.0
        %706 = vmatpush1.xpose.msra.mxu0 0.0
        %707 = vmatprep.subr.mxu0 0.0
        %708 = vmatpush1.xpose.msra.mxu0 0.0
        %709 = vmatprep.subr.mxu0 0.0
        %710 = vmatpush1.xpose.msra.mxu0 0.0
        %711 = vmatprep.subr.mxu0 0.0
        %712 = vmatpush1.xpose.msra.mxu0 0.0
        %713 = vmatprep.subr.mxu0 0.0
        %714 = vmatpush1.xpose.msra.mxu0 0.0
        %715 = vmatprep.subr.mxu0 0.0
        %716 = vmatpush1.xpose.msra.mxu0 0.0
        %717 = vmatprep.subr.mxu0 0.0
        %718 = vmatpush1.xpose.msra.mxu0 0.0
        %719 = vmatprep.subr.mxu0 0.0
        %720 = vmatpush1.xpose.msra.mxu0 0.0
        %721 = vmatprep.mubr.f32.mxu0 0.0
        %722 = vmatmul.mubr.f32.gmra.mrb[0].mxu0 %v653
        %v723 = vpop.f32.mrb[0].mxu0
        %v724 = vadd.f32 0.0, %v723
        %v725 = vpop.f32.mrb[0].mxu0
        %726 = vdwg.mxu0
        %v727 = vmul.f32 %v724, 0.125
        %v728 = vsel %vm564, %v727, -inf
        %729 = vmax.xlane.f32.xlu0 %v728
        %v730 = vpop.xlane.xlu0 %729
        %v731 = vsub.f32 %v727, %v730
        %v732 = vmul.f32 %v731, 1.442695
        %v733 = vpow.pop %v732
        %v734 = vsel %vm564, %v733, 0.0
        %735 = vadd.xlane.f32.xlu0 %v734
        %v736 = vpop.xlane.xlu0 %735
        %v737 = vrcp.pop %v736
        %v738 = vmul.f32 %v733, %v737
        %740 = vrot.lane.b32.xlu0 %v483, 64
        %v741 = vpop.permute.xlu0 %740
        %v744 = vsel %vm564, %v738, 0
        %746 = vmatprep.subr.mxu0 0.0
        %747 = vmatpush1.msra.mxu0 %v741
        %748 = vmatprep.subr.mxu0 0.0
        %749 = vmatpush1.msra.mxu0 0.0
        %750 = vmatprep.subr.mxu0 0.0
        %751 = vmatpush1.msra.mxu0 0.0
        %752 = vmatprep.subr.mxu0 0.0
        %753 = vmatpush1.msra.mxu0 0.0
        %754 = vmatprep.subr.mxu0 0.0
        %755 = vmatpush1.msra.mxu0 0.0
        %756 = vmatprep.subr.mxu0 0.0
        %757 = vmatpush1.msra.mxu0 0.0
        %758 = vmatprep.subr.mxu0 0.0
        %759 = vmatpush1.msra.mxu0 0.0
        %760 = vmatprep.subr.mxu0 0.0
        %761 = vmatpush1.msra.mxu0 0.0
        %762 = vmatprep.subr.mxu0 0.0
        %763 = vmatpush1.msra.mxu0 0.0
        %764 = vmatprep.subr.mxu0 0.0
        %765 = vmatpush1.msra.mxu0 0.0
        %766 = vmatprep.subr.mxu0 0.0
        %767 = vmatpush1.msra.mxu0 0.0
        %768 = vmatprep.subr.mxu0 0.0
        %769 = vmatpush1.msra.mxu0 0.0
        %770 = vmatprep.subr.mxu0 0.0
        %771 = vmatpush1.msra.mxu0 0.0
        %772 = vmatprep.subr.mxu0 0.0
        %773 = vmatpush1.msra.mxu0 0.0
        %774 = vmatprep.subr.mxu0 0.0
        %775 = vmatpush1.msra.mxu0 0.0
        %776 = vmatprep.subr.mxu0 0.0
        %777 = vmatpush1.msra.mxu0 0.0
        %778 = vmatprep.subr.mxu0 0.0
        %779 = vmatpush1.msra.mxu0 0.0
        %780 = vmatprep.subr.mxu0 0.0
        %781 = vmatpush1.msra.mxu0 0.0
        %782 = vmatprep.subr.mxu0 0.0
        %783 = vmatpush1.msra.mxu0 0.0
        %784 = vmatprep.subr.mxu0 0.0
        %785 = vmatpush1.msra.mxu0 0.0
        %786 = vmatprep.subr.mxu0 0.0
        %787 = vmatpush1.msra.mxu0 0.0
        %788 = vmatprep.subr.mxu0 0.0
        %789 = vmatpush1.msra.mxu0 0.0
        %790 = vmatprep.subr.mxu0 0.0
        %791 = vmatpush1.msra.mxu0 0.0
        %792 = vmatprep.subr.mxu0 0.0
        %793 = vmatpush1.msra.mxu0 0.0
        %794 = vmatprep.subr.mxu0 0.0
        %795 = vmatpush1.msra.mxu0 0.0
        %796 = vmatprep.subr.mxu0 0.0
        %797 = vmatpush1.msra.mxu0 0.0
        %798 = vmatprep.subr.mxu0 0.0
        %799 = vmatpush1.msra.mxu0 0.0
        %800 = vmatprep.subr.mxu0 0.0
        %801 = vmatpush1.msra.mxu0 0.0
        %802 = vmatprep.subr.mxu0 0.0
        %803 = vmatpush1.msra.mxu0 0.0
        %804 = vmatprep.subr.mxu0 0.0
        %805 = vmatpush1.msra.mxu0 0.0
        %806 = vmatprep.subr.mxu0 0.0
        %807 = vmatpush1.msra.mxu0 0.0
        %808 = vmatprep.subr.mxu0 0.0
        %809 = vmatpush1.msra.mxu0 0.0
        %810 = vmatprep.mubr.f32.mxu0 0.0
        %811 = vmatmul.mubr.f32.gmra.mrb[0].mxu0 %v744
        %v812 = vpop.f32.mrb[0].mxu0
        %v813 = vadd.f32 0.0, %v812
        %v814 = vpop.f32.mrb[0].mxu0
        %815 = vdwg.mxu0
        %817 = vrot.lane.b32.xlu0 %v813, 64
        %v818 = vpop.permute.xlu0 %817
        %v820 = vsel %vm486, %v646, %v818
        %v821 = vld [vmem:[#allocation7] sm:$0xff]
        %v822 = vld [vmem:[#allocation7 + $0x8] sm:$0xff]
        %v823 = vld [vmem:[#allocation7 + $0x10] sm:$0xff]
        %v824 = vld [vmem:[#allocation7 + $0x18] sm:$0xff]
        %v825 = vld [vmem:[#allocation7 + $0x20] sm:$0xff]
        %v826 = vld [vmem:[#allocation7 + $0x28] sm:$0xff]
        %v827 = vld [vmem:[#allocation7 + $0x30] sm:$0xff]
        %v828 = vld [vmem:[#allocation7 + $0x38] sm:$0xff]
        %v829 = vld [vmem:[#allocation7 + $0x40] sm:$0xff]
        %v830 = vld [vmem:[#allocation7 + $0x48] sm:$0xff]
        %v831 = vld [vmem:[#allocation7 + $0x50] sm:$0xff]
        %v832 = vld [vmem:[#allocation7 + $0x58] sm:$0xff]
        %v833 = vld [vmem:[#allocation7 + $0x60] sm:$0xff]
        %v834 = vld [vmem:[#allocation7 + $0x68] sm:$0xff]
        %v835 = vld [vmem:[#allocation7 + $0x70] sm:$0xff]
        %v836 = vld [vmem:[#allocation7 + $0x78] sm:$0xff]
        %v837 = vld [vmem:[%s3] sm:$0x1]
        %v839 = vlaneseq
        %v840 = vshrl.u32 %v839, 7
        %v841 = vsub.s32 0, %v840
        %v842 = vrot.slane %v837, %v841
        %844 = vmatprep.subr.mxu0 0.0
        %845 = vmatpush1.msra.mxu0 %v821
        %846 = vmatprep.subr.mxu0 0.0
        %847 = vmatpush1.msra.mxu0 %v822
        %848 = vmatprep.subr.mxu0 0.0
        %849 = vmatpush1.msra.mxu0 %v823
        %850 = vmatprep.subr.mxu0 0.0
        %851 = vmatpush1.msra.mxu0 %v824
        %852 = vmatprep.subr.mxu0 0.0
        %853 = vmatpush1.msra.mxu0 %v825
        %854 = vmatprep.subr.mxu0 0.0
        %855 = vmatpush1.msra.mxu0 %v826
        %856 = vmatprep.subr.mxu0 0.0
        %857 = vmatpush1.msra.mxu0 %v827
        %858 = vmatprep.subr.mxu0 0.0
        %859 = vmatpush1.msra.mxu0 %v828
        %860 = vmatprep.subr.mxu0 0.0
        %861 = vmatpush1.msra.mxu0 %v829
        %862 = vmatprep.subr.mxu0 0.0
        %863 = vmatpush1.msra.mxu0 %v830
        %864 = vmatprep.subr.mxu0 0.0
        %865 = vmatpush1.msra.mxu0 %v831
        %866 = vmatprep.subr.mxu0 0.0
        %867 = vmatpush1.msra.mxu0 %v832
        %868 = vmatprep.subr.mxu0 0.0
        %869 = vmatpush1.msra.mxu0 %v833
        %870 = vmatprep.subr.mxu0 0.0
        %871 = vmatpush1.msra.mxu0 %v834
        %872 = vmatprep.subr.mxu0 0.0
        %873 = vmatpush1.msra.mxu0 %v835
        %874 = vmatprep.subr.mxu0 0.0
        %875 = vmatpush1.msra.mxu0 %v836
        %876 = vmatprep.subr.mxu0 0.0
        %877 = vmatpush1.msra.mxu0 0.0
        %878 = vmatprep.subr.mxu0 0.0
        %879 = vmatpush1.msra.mxu0 0.0
        %880 = vmatprep.subr.mxu0 0.0
        %881 = vmatpush1.msra.mxu0 0.0
        %882 = vmatprep.subr.mxu0 0.0
        %883 = vmatpush1.msra.mxu0 0.0
        %884 = vmatprep.subr.mxu0 0.0
        %885 = vmatpush1.msra.mxu0 0.0
        %886 = vmatprep.subr.mxu0 0.0
        %887 = vmatpush1.msra.mxu0 0.0
        %888 = vmatprep.subr.mxu0 0.0
        %889 = vmatpush1.msra.mxu0 0.0
        %890 = vmatprep.subr.mxu0 0.0
        %891 = vmatpush1.msra.mxu0 0.0
        %892 = vmatprep.subr.mxu0 0.0
        %893 = vmatpush1.msra.mxu0 0.0
        %894 = vmatprep.subr.mxu0 0.0
        %895 = vmatpush1.msra.mxu0 0.0
        %896 = vmatprep.subr.mxu0 0.0
        %897 = vmatpush1.msra.mxu0 0.0
        %898 = vmatprep.subr.mxu0 0.0
        %899 = vmatpush1.msra.mxu0 0.0
        %900 = vmatprep.subr.mxu0 0.0
        %901 = vmatpush1.msra.mxu0 0.0
        %902 = vmatprep.subr.mxu0 0.0
        %903 = vmatpush1.msra.mxu0 0.0
        %904 = vmatprep.subr.mxu0 0.0
        %905 = vmatpush1.msra.mxu0 0.0
        %906 = vmatprep.subr.mxu0 0.0
        %907 = vmatpush1.msra.mxu0 0.0
        %908 = vmatprep.mubr.f32.mxu0 0.0
        %909 = vmatmul.mubr.f32.gmra.mrb[0].mxu0 %v820
        %v910 = vpop.f32.mrb[0].mxu0
        %v911 = vadd.f32 %v842, %v910
        %v912 = vpop.f32.mrb[0].mxu0
        %913 = vdwg.mxu0
        %v914 = vadd.f32 %v911, %v296
        %915 = vadd.xlane.f32.xlu0 %v914
        %v916 = vpop.xlane.xlu0 %915
        %v917 = vrcp.pop 128.0
        %v918 = vmul.f32 %v916, %v917
        %v919 = vsub.f32 %v914, %v918
        %v920 = vmul.f32 %v919, %v919
        %921 = vadd.xlane.f32.xlu0 %v920
        %v922 = vpop.xlane.xlu0 %921
        %v923 = vmul.f32 %v922, %v917
        %v924 = vadd.f32 %v923, 1e-05
        %v925 = vrsqrt.pop %v924
        %v926 = vmul.f32 %v919, %v925
        %v927 = vld [vmem:[%s4] sm:$0x1]
        %v929 = vlaneseq
        %v930 = vshrl.u32 %v929, 7
        %v931 = vsub.s32 0, %v930
        %v932 = vrot.slane %v927, %v931
        %v934 = vmul.f32 %v926, %v932
        %v935 = vld [vmem:[%s5] sm:$0x1]
        %v937 = vlaneseq
        %v938 = vshrl.u32 %v937, 7
        %v939 = vsub.s32 0, %v938
        %v940 = vrot.slane %v935, %v939
        %v942 = vadd.f32 %v934, %v940
        %943 = vst [vmem:[%s295] sm:$0xff] %v942
        %s944 = sand.u32 %s163, 1
        %s945 = scalar_lea.sflag [#allocation4], %s944
        %s946 = sand.u32 %s163, 1
        %s947 = smul.addr %s946, 8
        %s948 = scalar_lea.vmem [#allocation8], %s947
        // Predicated region
        $region57: #{tpu_custom_call.1} parent=43 // pred_check
          %p949 = pneg %p173
        $region58: #{tpu_custom_call.1} parent=43 // pred_check_branch
          %951 = sbr.rel (%p949) target = $region60
        $region59: #{tpu_custom_call.1} parent=43 // pred_region
          %s953 = ssub.s32 128, 128
          %954 = vsyncadd %s945, %s953
          %s955 = smul.addr %s24, 128
          %s956 = scalar_lea.hbm %s6, %s955
          %s958 = sshll.u32 %s948, 4
          %s959 = int_to_ptr.vmem [resolvable:$true] %s958
          %961 = dma.vmem_to_hbm [thread:$0]  %s959, 128, %s956, %s945
        $region60: #{tpu_custom_call.1} parent=43 // pred_fallthru
          _
      $region44: #{tpu_custom_call.1} parent=5 // pred_fallthru
        _
      %p962 = scmp.le.s32.totalorder 2, %s19
      // Predicated region
      $region61: #{tpu_custom_call.1} parent=5 // pred_check
        %p963 = pneg %p962
      $region62: #{tpu_custom_call.1} parent=5 // pred_check_branch
        %965 = sbr.rel (%p963) target = $region64
      $region63: #{tpu_custom_call.1} parent=5 // pred_region
        %s966 = ssub.s32 %s19, 2
        // Predicated region
        $region65: #{tpu_custom_call.1} parent=63 // pred_check
          %p967 = pneg %p179
        $region66: #{tpu_custom_call.1} parent=63 // pred_check_branch
          %969 = sbr.rel (%p967) target = $region68
        $region67: #{tpu_custom_call.1} parent=63 // pred_region
          %s970 = sand.u32 %s164, 1
          %s971 = scalar_lea.sflag [#allocation4], %s970
          %s972 = sand.u32 %s164, 1
          %s973 = smul.addr %s972, 8
          %s974 = scalar_lea.vmem [#allocation8], %s973
          %975 = dma.done %s971, 128
        $region68: #{tpu_custom_call.1} parent=63 // pred_fallthru
          _
      $region64: #{tpu_custom_call.1} parent=5 // pred_fallthru
        _
    $region6: #{tpu_custom_call.1} parent=1 // loop_footer
      %s23 = sadd.s32 1, %s19
    $region7: #{tpu_custom_call.1} parent=1 // loop_footer_branch
      %18 = sbr.rel target = $region3
    $region8: #{tpu_custom_call.1} parent=1 // loop_exit
      _
    %976 = vsyncpa [#allocation3], 1
    %s977 = scalar_lea.sflag [#allocation3], 1
    %978 = vsyncpa %s977, 1
    %979 = vsyncpa [#allocation6], 1
    %980 = vsyncpa [#allocation4], 1
    %s981 = scalar_lea.sflag [#allocation4], 1
    %982 = vsyncpa %s981, 1

// kernel: tpu_custom_call.1
$region0: #{tpu_custom_call.1}
  #allocation0 [shape = 'u32[]', space=smem, size = 0x4, offset = 0x4, fixed_abs, tag = 'smem constant byte address 0x4 - core index']
  #allocation1 [shape = 'u32[144,128]{1,0:T(1,128)}', space=vmem, size = 0x12000, scoped, tag = 'internal scratch']
  %s0 = inlined_call_operand.hbm [shape: f32[2,8,128], index: 0, kind: input, shape index: {}]
  %s1 = inlined_call_operand.hbm [shape: f32[128,384], index: 1, kind: input, shape index: {}]
  %s2 = inlined_call_operand.hbm [shape: f32[128,128], index: 2, kind: input, shape index: {}]
  %s3 = inlined_call_operand.vmem [shape: f32[1,128], index: 3, kind: input, shape index: {}]
  %s4 = inlined_call_operand.vmem [shape: f32[1,128], index: 4, kind: input, shape index: {}]
  %s5 = inlined_call_operand.vmem [shape: f32[1,128], index: 5, kind: input, shape index: {}]
  %s6 = inlined_call_operand.hbm [shape: f32[2,8,128], index: 6, kind: output, shape index: {}]
  %s7 = sld [smem:[#allocation0]]
  $region69: #{tpu_custom_call.1} parent=0
    _
  %s9 = ssub.s32 1, %s7
  %s10 = scalar_select 0, %s9, %s7
  $region1: #{tpu_custom_call.1} parent=0
    #allocation2 [shape = 'u8[8192]{0}', space=vmem, size = 0x2000, scoped, tag = 'input window, operand 0']
    #allocation3 [shape = 's32[2]{0}', space=sflag, size = 0x8, scoped, tag = 'scoped memory for tpu_custom_call.1']
    #allocation4 [shape = 's32[2]{0}', space=sflag, size = 0x8, scoped, tag = 'scoped memory for tpu_custom_call.1']
    #allocation5 [shape = 'u8[196608]{0}', space=vmem, size = 0x30000, scoped, tag = 'input window, operand 1, single buffered']
    #allocation6 [shape = 's32[1]{0}', space=sflag, size = 0x4, scoped, tag = 'scoped memory for tpu_custom_call.1']
    #allocation7 [shape = 'u8[65536]{0}', space=vmem, size = 0x10000, scoped, tag = 'input window, operand 2, single buffered']
    #allocation8 [shape = 'u8[8192]{0}', space=vmem, size = 0x2000, scoped, tag = 'output window, operand 0']
    %11 = vsyncpa [#allocation3], 0
    %s12 = scalar_lea.sflag [#allocation3], 1
    %13 = vsyncpa %s12, 0
    %14 = vsyncpa [#allocation6], 0
    %15 = vsyncpa [#allocation4], 0
    %s16 = scalar_lea.sflag [#allocation4], 1
    %17 = vsyncpa %s16, 0
    loop: start=0, step=1, limit=4
    $region2: #{tpu_custom_call.1} parent=1 // loop_pre_header
      _
    $region3: #{tpu_custom_call.1} parent=1 // loop_header
      %s19 = sphi 0, %s23
      %p20 = scmp.ge.s32.totalorder %s19, 4
      %s29 = sphi 0, %s31
      %s32 = sphi 0, %s29
      %s33 = sphi 0, %s32
      %s49 = sphi 0, %s33
      %s53 = sphi 0, %s53
      %s55 = sphi 0, %s53
      %s56 = sphi 0, %s55
      %s70 = sphi 0, %s56
      %s74 = sphi 0, %s74
      %s76 = sphi 0, %s74
      %s77 = sphi 0, %s76
      %s91 = sphi 0, %s77
      %s95 = sphi 0, %s95
      %s97 = sphi 0, %s95
      %s98 = sphi 0, %s97
      %s112 = sphi 0, %s98
      %s116 = sphi 0, %s116
      %s118 = sphi 0, %s116
      %s119 = sphi 0, %s118
      %s133 = sphi 0, %s119
      %s137 = sphi 0, %s137
      %s139 = sphi 0, %s137
      %s140 = sphi 0, %s139
      %s154 = sphi 0, %s140
      %s160 = sphi 0, %s162
      %s163 = sphi 0, %s160
      %s164 = sphi 0, %s163
      %s180 = sphi 0, %s164
    $region4: #{tpu_custom_call.1} parent=1 // loop_header_branch
      %22 = sbr.rel (%p20) target = $region8
    $region5: #{tpu_custom_call.1} parent=1 // loop_body
      %s24 = ssub.s32 %s19, 1
      %s25 = ssub.s32 %s19, 2
      %s26 = sadd.s32 %s19, 1
      %s27 = ssub.s32 %s19, %s26
      %p28 = scmp.eq.s32.totalorder %s27, 0
      %s30 = sadd.s32 %s29, 1
      %s31 = scalar_select %p28, %s29, %s30
      %p34 = pneg %p28
      %p35 = scmp.eq.s32.totalorder %s19, 1
      %p36 = por %p34, %p35
      %p37 = scmp.ne.s32.totalorder %s29, %s32
      %p38 = scmp.eq.s32.totalorder %s19, 0
      %p39 = por %p37, %p38
      %p40 = scmp.ne.s32.totalorder %s29, %s32
      %p41 = scmp.eq.s32.totalorder %s24, 1
      %p42 = por %p40, %p41
      %p43 = scmp.ne.s32.totalorder %s32, %s33
      %p44 = scmp.eq.s32.totalorder %s24, 0
      %p45 = por %p43, %p44
      %p46 = scmp.ne.s32.totalorder %s32, %s33
      %p47 = scmp.eq.s32.totalorder %s25, 1
      %p48 = por %p46, %p47
      %p50 = scmp.ne.s32.totalorder %s33, %s49
      %p51 = scmp.eq.s32.totalorder %s25, 0
      %p52 = por %p50, %p51
      %s54 = sadd.s32 %s53, 1
      %p57 = scmp.eq.s32.totalorder %s19, 1
      %p58 = scmp.ne.s32.totalorder %s53, %s55
      %p59 = scmp.eq.s32.totalorder %s19, 0
      %p60 = por %p58, %p59
      %p61 = scmp.ne.s32.totalorder %s53, %s55
      %p62 = scmp.eq.s32.totalorder %s24, 1
      %p63 = por %p61, %p62
      %p64 = scmp.ne.s32.totalorder %s55, %s56
      %p65 = scmp.eq.s32.totalorder %s24, 0
      %p66 = por %p64, %p65
      %p67 = scmp.ne.s32.totalorder %s55, %s56
      %p68 = scmp.eq.s32.totalorder %s25, 1
      %p69 = por %p67, %p68
      %p71 = scmp.ne.s32.totalorder %s56, %s70
      %p72 = scmp.eq.s32.totalorder %s25, 0
      %p73 = por %p71, %p72
      %s75 = sadd.s32 %s74, 1
      %p78 = scmp.eq.s32.totalorder %s19, 1
      %p79 = scmp.ne.s32.totalorder %s74, %s76
      %p80 = scmp.eq.s32.totalorder %s19, 0
      %p81 = por %p79, %p80
      %p82 = scmp.ne.s32.totalorder %s74, %s76
      %p83 = scmp.eq.s32.totalorder %s24, 1
      %p84 = por %p82, %p83
      %p85 = scmp.ne.s32.totalorder %s76, %s77
      %p86 = scmp.eq.s32.totalorder %s24, 0
      %p87 = por %p85, %p86
      %p88 = scmp.ne.s32.totalorder %s76, %s77
      %p89 = scmp.eq.s32.totalorder %s25, 1
      %p90 = por %p88, %p89
      %p92 = scmp.ne.s32.totalorder %s77, %s91
      %p93 = scmp.eq.s32.totalorder %s25, 0
      %p94 = por %p92, %p93
      %s96 = sadd.s32 %s95, 1
      %p99 = scmp.eq.s32.totalorder %s19, 1
      %p100 = scmp.ne.s32.totalorder %s95, %s97
      %p101 = scmp.eq.s32.totalorder %s19, 0
      %p102 = por %p100, %p101
      %p103 = scmp.ne.s32.totalorder %s95, %s97
      %p104 = scmp.eq.s32.totalorder %s24, 1
      %p105 = por %p103, %p104
      %p106 = scmp.ne.s32.totalorder %s97, %s98
      %p107 = scmp.eq.s32.totalorder %s24, 0
      %p108 = por %p106, %p107
      %p109 = scmp.ne.s32.totalorder %s97, %s98
      %p110 = scmp.eq.s32.totalorder %s25, 1
      %p111 = por %p109, %p110
      %p113 = scmp.ne.s32.totalorder %s98, %s112
      %p114 = scmp.eq.s32.totalorder %s25, 0
      %p115 = por %p113, %p114
      %s117 = sadd.s32 %s116, 1
      %p120 = scmp.eq.s32.totalorder %s19, 1
      %p121 = scmp.ne.s32.totalorder %s116, %s118
      %p122 = scmp.eq.s32.totalorder %s19, 0
      %p123 = por %p121, %p122
      %p124 = scmp.ne.s32.totalorder %s116, %s118
      %p125 = scmp.eq.s32.totalorder %s24, 1
      %p126 = por %p124, %p125
      %p127 = scmp.ne.s32.totalorder %s118, %s119
      %p128 = scmp.eq.s32.totalorder %s24, 0
      %p129 = por %p127, %p128
      %p130 = scmp.ne.s32.totalorder %s118, %s119
      %p131 = scmp.eq.s32.totalorder %s25, 1
      %p132 = por %p130, %p131
      %p134 = scmp.ne.s32.totalorder %s119, %s133
      %p135 = scmp.eq.s32.totalorder %s25, 0
      %p136 = por %p134, %p135
      %s138 = sadd.s32 %s137, 1
      %p141 = scmp.eq.s32.totalorder %s19, 1
      %p142 = scmp.ne.s32.totalorder %s137, %s139
      %p143 = scmp.eq.s32.totalorder %s19, 0
      %p144 = por %p142, %p143
      %p145 = scmp.ne.s32.totalorder %s137, %s139
      %p146 = scmp.eq.s32.totalorder %s24, 1
      %p147 = por %p145, %p146
      %p148 = scmp.ne.s32.totalorder %s139, %s140
      %p149 = scmp.eq.s32.totalorder %s24, 0
      %p150 = por %p148, %p149
      %p151 = scmp.ne.s32.totalorder %s139, %s140
      %p152 = scmp.eq.s32.totalorder %s25, 1
      %p153 = por %p151, %p152
      %p155 = scmp.ne.s32.totalorder %s140, %s154
      %p156 = scmp.eq.s32.totalorder %s25, 0
      %p157 = por %p155, %p156
      %s158 = ssub.s32 %s19, %s26
      %p159 = scmp.eq.s32.totalorder %s158, 0
      %s161 = sadd.s32 %s160, 1
      %s162 = scalar_select %p159, %s160, %s161
      %p165 = pneg %p159
      %p166 = scmp.eq.s32.totalorder %s19, 1
      %p167 = por %p165, %p166
      %p168 = scmp.ne.s32.totalorder %s160, %s163
      %p169 = scmp.eq.s32.totalorder %s19, 0
      %p170 = por %p168, %p169
      %p171 = scmp.ne.s32.totalorder %s160, %s163
      %p172 = scmp.eq.s32.totalorder %s24, 1
      %p173 = por %p171, %p172
      %p174 = scmp.ne.s32.totalorder %s163, %s164
      %p175 = scmp.eq.s32.totalorder %s24, 0
      %p176 = por %p174, %p175
      %p177 = scmp.ne.s32.totalorder %s163, %s164
      %p178 = scmp.eq.s32.totalorder %s25, 1
      %p179 = por %p177, %p178
      %p181 = scmp.ne.s32.totalorder %s164, %s180
      %p182 = scmp.eq.s32.totalorder %s25, 0
      %p183 = por %p181, %p182
      %p184 = scmp.le.s32.totalorder 1, %s19
      %p185 = scmp.lt.s32.totalorder %s19, 3
      %p186 = pnand %p184, %p185
      %p187 = pneg %p186
      // Predicated region
      $region9: #{tpu_custom_call.1} parent=5 // pred_check
        _
      $region10: #{tpu_custom_call.1} parent=5 // pred_check_branch
        %189 = sbr.rel (%p186) target = $region12
      $region11: #{tpu_custom_call.1} parent=5 // pred_region
        %s190 = ssub.s32 %s19, 1
        // Predicated region
        $region13: #{tpu_custom_call.1} parent=11 // pred_check
          %p191 = pneg %p66
        $region14: #{tpu_custom_call.1} parent=11 // pred_check_branch
          %193 = sbr.rel (%p191) target = $region16
        $region15: #{tpu_custom_call.1} parent=11 // pred_region
          %s195 = ssub.s32 6144, 6144
          %196 = vsyncadd [#allocation6], %s195
          %s197 = sshll.u32 [#allocation5], 4
          %s198 = int_to_ptr.vmem [resolvable:$true] %s197
          %203 = dma.hbm_to_vmem [thread:$0]  %s1, 6144, %s198, [#allocation6], 384, 384, 24
        $region16: #{tpu_custom_call.1} parent=11 // pred_fallthru
          _
        // Predicated region
        $region17: #{tpu_custom_call.1} parent=11 // pred_check
          %p204 = pneg %p87
        $region18: #{tpu_custom_call.1} parent=11 // pred_check_branch
          %206 = sbr.rel (%p204) target = $region20
        $region19: #{tpu_custom_call.1} parent=11 // pred_region
          %s208 = ssub.s32 2048, 2048
          %209 = vsyncadd [#allocation6], %s208
          %s210 = sshll.u32 [#allocation7], 4
          %s211 = int_to_ptr.vmem [resolvable:$true] %s210
          %216 = dma.hbm_to_vmem [thread:$0]  %s2, 2048, %s211, [#allocation6], 128, 128, 8
        $region20: #{tpu_custom_call.1} parent=11 // pred_fallthru
          _
        // Predicated region
        $region21: #{tpu_custom_call.1} parent=11 // pred_check
          %p217 = pneg %p108
        $region22: #{tpu_custom_call.1} parent=11 // pred_check_branch
          %219 = sbr.rel (%p217) target = $region24
        $region23: #{tpu_custom_call.1} parent=11 // pred_region
          _
        $region24: #{tpu_custom_call.1} parent=11 // pred_fallthru
          _
        // Predicated region
        $region25: #{tpu_custom_call.1} parent=11 // pred_check
          %p220 = pneg %p129
        $region26: #{tpu_custom_call.1} parent=11 // pred_check_branch
          %222 = sbr.rel (%p220) target = $region28
        $region27: #{tpu_custom_call.1} parent=11 // pred_region
          _
        $region28: #{tpu_custom_call.1} parent=11 // pred_fallthru
          _
        // Predicated region
        $region29: #{tpu_custom_call.1} parent=11 // pred_check
          %p223 = pneg %p150
        $region30: #{tpu_custom_call.1} parent=11 // pred_check_branch
          %225 = sbr.rel (%p223) target = $region32
        $region31: #{tpu_custom_call.1} parent=11 // pred_region
          _
        $region32: #{tpu_custom_call.1} parent=11 // pred_fallthru
          _
      $region12: #{tpu_custom_call.1} parent=5 // pred_fallthru
        _
      %p226 = scmp.lt.s32.totalorder %s19, 2
      // Predicated region
      $region33: #{tpu_custom_call.1} parent=5 // pred_check
        %p227 = pneg %p226
      $region34: #{tpu_custom_call.1} parent=5 // pred_check_branch
        %229 = sbr.rel (%p227) target = $region36
      $region35: #{tpu_custom_call.1} parent=5 // pred_region
        // Predicated region
        $region37: #{tpu_custom_call.1} parent=35 // pred_check
          %p230 = pneg %p39
        $region38: #{tpu_custom_call.1} parent=35 // pred_check_branch
          %232 = sbr.rel (%p230) target = $region40
        $region39: #{tpu_custom_call.1} parent=35 // pred_region
          %s233 = sand.u32 %s29, 1
          %s234 = scalar_lea.sflag [#allocation3], %s233
          %s235 = sand.u32 %s29, 1
          %s236 = smul.addr %s235, 8
          %s237 = scalar_lea.vmem [#allocation2], %s236
          %s239 = ssub.s32 128, 128
          %240 = vsyncadd %s234, %s239
          %s241 = smul.addr %s19, 128
          %s242 = scalar_lea.hbm %s0, %s241
          %s244 = sshll.u32 %s237, 4
          %s245 = int_to_ptr.vmem [resolvable:$true] %s244
          %247 = dma.hbm_to_vmem [thread:$0]  %s242, 128, %s245, %s234
        $region40: #{tpu_custom_call.1} parent=35 // pred_fallthru
          _
      $region36: #{tpu_custom_call.1} parent=5 // pred_fallthru
        _
      %p248 = scmp.le.s32.totalorder 1, %s19
      %p249 = scmp.lt.s32.totalorder %s19, 3
      %p250 = pnand %p248, %p249
      %p251 = pneg %p250
      // Predicated region
      $region41: #{tpu_custom_call.1} parent=5 // pred_check
        _
      $region42: #{tpu_custom_call.1} parent=5 // pred_check_branch
        %253 = sbr.rel (%p250) target = $region44
      $region43: #{tpu_custom_call.1} parent=5 // pred_region
        %s254 = ssub.s32 %s19, 1
        %s255 = sand.u32 %s32, 1
        %s256 = scalar_lea.sflag [#allocation3], %s255
        %s257 = sand.u32 %s32, 1
        %s258 = smul.addr %s257, 8
        %s259 = scalar_lea.vmem [#allocation2], %s258
        // Predicated region
        $region45: #{tpu_custom_call.1} parent=43 // pred_check
          %p260 = pneg %p45
        $region46: #{tpu_custom_call.1} parent=43 // pred_check_branch
          %262 = sbr.rel (%p260) target = $region48
        $region47: #{tpu_custom_call.1} parent=43 // pred_region
          %263 = dma.done %s256, 128
        $region48: #{tpu_custom_call.1} parent=43 // pred_fallthru
          _
        // Predicated region
        $region49: #{tpu_custom_call.1} parent=43 // pred_check
          %p264 = pneg %p66
        $region50: #{tpu_custom_call.1} parent=43 // pred_check_branch
          %266 = sbr.rel (%p264) target = $region52
        $region51: #{tpu_custom_call.1} parent=43 // pred_region
          %267 = dma.done [#allocation6], 6144
        $region52: #{tpu_custom_call.1} parent=43 // pred_fallthru
          _
        // Predicated region
        $region53: #{tpu_custom_call.1} parent=43 // pred_check
          %p268 = pneg %p87
        $region54: #{tpu_custom_call.1} parent=43 // pred_check_branch
          %270 = sbr.rel (%p268) target = $region56
        $region55: #{tpu_custom_call.1} parent=43 // pred_region
          %271 = dma.done [#allocation6], 2048
        $region56: #{tpu_custom_call.1} parent=43 // pred_fallthru
          _
        %s272 = sand.u32 %s32, 1
        %s273 = scalar_lea.sflag [#allocation3], %s272
        %s274 = sand.u32 %s32, 1
        %s275 = smul.addr %s274, 8
        %s276 = scalar_lea.vmem [#allocation2], %s275
        %p277 = pneg %p45
        %p278 = pneg %p42
        %p279 = pneg %p66
        %p280 = pneg %p63
        %p281 = pneg %p87
        %p282 = pneg %p84
        %p283 = pneg %p108
        %p284 = pneg %p105
        %p285 = pneg %p129
        %p286 = pneg %p126
        %p287 = pneg %p150
        %p288 = pneg %p147
        %p289 = pneg %p176
        %p290 = pneg %p173
        %s291 = sand.u32 %s163, 1
        %s292 = scalar_lea.sflag [#allocation4], %s291
        %s293 = sand.u32 %s163, 1
        %s294 = smul.addr %s293, 8
        %s295 = scalar_lea.vmem [#allocation8], %s294
        %v296 = vld [vmem:[%s259] sm:$0xff]
        %v297 = vld [vmem:[#allocation5] sm:$0xff]
        %v298 = vld [vmem:[#allocation5 + $0x8] sm:$0xff]
        %v299 = vld [vmem:[#allocation5 + $0x10] sm:$0xff]
        %v300 = vld [vmem:[#allocation5 + $0x18] sm:$0xff]
        %v301 = vld [vmem:[#allocation5 + $0x20] sm:$0xff]
        %v302 = vld [vmem:[#allocation5 + $0x28] sm:$0xff]
        %v303 = vld [vmem:[#allocation5 + $0x30] sm:$0xff]
        %v304 = vld [vmem:[#allocation5 + $0x38] sm:$0xff]
        %v305 = vld [vmem:[#allocation5 + $0x40] sm:$0xff]
        %v306 = vld [vmem:[#allocation5 + $0x48] sm:$0xff]
        %v307 = vld [vmem:[#allocation5 + $0x50] sm:$0xff]
        %v308 = vld [vmem:[#allocation5 + $0x58] sm:$0xff]
        %v309 = vld [vmem:[#allocation5 + $0x60] sm:$0xff]
        %v310 = vld [vmem:[#allocation5 + $0x68] sm:$0xff]
        %v311 = vld [vmem:[#allocation5 + $0x70] sm:$0xff]
        %v312 = vld [vmem:[#allocation5 + $0x78] sm:$0xff]
        %v313 = vld [vmem:[#allocation5 + $0x80] sm:$0xff]
        %v314 = vld [vmem:[#allocation5 + $0x88] sm:$0xff]
        %v315 = vld [vmem:[#allocation5 + $0x90] sm:$0xff]
        %v316 = vld [vmem:[#allocation5 + $0x98] sm:$0xff]
        %v317 = vld [vmem:[#allocation5 + $0xa0] sm:$0xff]
        %v318 = vld [vmem:[#allocation5 + $0xa8] sm:$0xff]
        %v319 = vld [vmem:[#allocation5 + $0xb0] sm:$0xff]
        %v320 = vld [vmem:[#allocation5 + $0xb8] sm:$0xff]
        %v321 = vld [vmem:[#allocation5 + $0xc0] sm:$0xff]
        %v322 = vld [vmem:[#allocation5 + $0xc8] sm:$0xff]
        %v323 = vld [vmem:[#allocation5 + $0xd0] sm:$0xff]
        %v324 = vld [vmem:[#allocation5 + $0xd8] sm:$0xff]
        %v325 = vld [vmem:[#allocation5 + $0xe0] sm:$0xff]
        %v326 = vld [vmem:[#allocation5 + $0xe8] sm:$0xff]
        %v327 = vld [vmem:[#allocation5 + $0xf0] sm:$0xff]
        %v328 = vld [vmem:[#allocation5 + $0xf8] sm:$0xff]
        %v329 = vld [vmem:[#allocation5 + $0x100] sm:$0xff]
        %v330 = vld [vmem:[#allocation5 + $0x108] sm:$0xff]
        %v331 = vld [vmem:[#allocation5 + $0x110] sm:$0xff]
        %v332 = vld [vmem:[#allocation5 + $0x118] sm:$0xff]
        %v333 = vld [vmem:[#allocation5 + $0x120] sm:$0xff]
        %v334 = vld [vmem:[#allocation5 + $0x128] sm:$0xff]
        %v335 = vld [vmem:[#allocation5 + $0x130] sm:$0xff]
        %v336 = vld [vmem:[#allocation5 + $0x138] sm:$0xff]
        %v337 = vld [vmem:[#allocation5 + $0x140] sm:$0xff]
        %v338 = vld [vmem:[#allocation5 + $0x148] sm:$0xff]
        %v339 = vld [vmem:[#allocation5 + $0x150] sm:$0xff]
        %v340 = vld [vmem:[#allocation5 + $0x158] sm:$0xff]
        %v341 = vld [vmem:[#allocation5 + $0x160] sm:$0xff]
        %v342 = vld [vmem:[#allocation5 + $0x168] sm:$0xff]
        %v343 = vld [vmem:[#allocation5 + $0x170] sm:$0xff]
        %v344 = vld [vmem:[#allocation5 + $0x178] sm:$0xff]
        %345 = vmatprep.subr.mxu0 %v298
        %346 = vmatpush1.msra.mxu0 %v297
        %347 = vmatprep.subr.mxu0 %v301
        %348 = vmatpush1.msra.mxu0 %v300
        %349 = vmatprep.subr.mxu0 %v304
        %350 = vmatpush1.msra.mxu0 %v303
        %351 = vmatprep.subr.mxu0 %v307
        %352 = vmatpush1.msra.mxu0 %v306
        %353 = vmatprep.subr.mxu0 %v310
        %354 = vmatpush1.msra.mxu0 %v309
        %355 = vmatprep.subr.mxu0 %v313
        %356 = vmatpush1.msra.mxu0 %v312
        %357 = vmatprep.subr.mxu0 %v316
        %358 = vmatpush1.msra.mxu0 %v315
        %359 = vmatprep.subr.mxu0 %v319
        %360 = vmatpush1.msra.mxu0 %v318
        %361 = vmatprep.subr.mxu0 %v322
        %362 = vmatpush1.msra.mxu0 %v321
        %363 = vmatprep.subr.mxu0 %v325
        %364 = vmatpush1.msra.mxu0 %v324
        %365 = vmatprep.subr.mxu0 %v328
        %366 = vmatpush1.msra.mxu0 %v327
        %367 = vmatprep.subr.mxu0 %v331
        %368 = vmatpush1.msra.mxu0 %v330
        %369 = vmatprep.subr.mxu0 %v334
        %370 = vmatpush1.msra.mxu0 %v333
        %371 = vmatprep.subr.mxu0 %v337
        %372 = vmatpush1.msra.mxu0 %v336
        %373 = vmatprep.subr.mxu0 %v340
        %374 = vmatpush1.msra.mxu0 %v339
        %375 = vmatprep.subr.mxu0 %v343
        %376 = vmatpush1.msra.mxu0 %v342
        %377 = vmatprep.subr.mxu0 0.0
        %378 = vmatpush1.msra.mxu0 0.0
        %379 = vmatprep.subr.mxu0 0.0
        %380 = vmatpush1.msra.mxu0 0.0
        %381 = vmatprep.subr.mxu0 0.0
        %382 = vmatpush1.msra.mxu0 0.0
        %383 = vmatprep.subr.mxu0 0.0
        %384 = vmatpush1.msra.mxu0 0.0
        %385 = vmatprep.subr.mxu0 0.0
        %386 = vmatpush1.msra.mxu0 0.0
        %387 = vmatprep.subr.mxu0 0.0
        %388 = vmatpush1.msra.mxu0 0.0
        %389 = vmatprep.subr.mxu0 0.0
        %390 = vmatpush1.msra.mxu0 0.0
        %391 = vmatprep.subr.mxu0 0.0
        %392 = vmatpush1.msra.mxu0 0.0
        %393 = vmatprep.subr.mxu0 0.0
        %394 = vmatpush1.msra.mxu0 0.0
        %395 = vmatprep.subr.mxu0 0.0
        %396 = vmatpush1.msra.mxu0 0.0
        %397 = vmatprep.subr.mxu0 0.0
        %398 = vmatpush1.msra.mxu0 0.0
        %399 = vmatprep.subr.mxu0 0.0
        %400 = vmatpush1.msra.mxu0 0.0
        %401 = vmatprep.subr.mxu0 0.0
        %402 = vmatpush1.msra.mxu0 0.0
        %403 = vmatprep.subr.mxu0 0.0
        %404 = vmatpush1.msra.mxu0 0.0
        %405 = vmatprep.subr.mxu0 0.0
        %406 = vmatpush1.msra.mxu0 0.0
        %407 = vmatprep.subr.mxu0 0.0
        %408 = vmatpush1.msra.mxu0 0.0
        %409 = vmatprep.mubr.f32.mxu0 0.0
        %410 = vmatmul.mubr.f32.gmra.mrb[0].mxu0 %v296
        %v411 = vpop.f32.mrb[0].mxu0
        %v412 = vadd.f32 0.0, %v411
        %v413 = vpop.f32.mrb[0].mxu0
        %v414 = vadd.f32 0.0, %v413
        %415 = vdwg.mxu0
        %416 = vmatprep.subr.mxu0 0.0
        %417 = vmatpush1.msra.mxu0 %v299
        %418 = vmatprep.subr.mxu0 0.0
        %419 = vmatpush1.msra.mxu0 %v302
        %420 = vmatprep.subr.mxu0 0.0
        %421 = vmatpush1.msra.mxu0 %v305
        %422 = vmatprep.subr.mxu0 0.0
        %423 = vmatpush1.msra.mxu0 %v308
        %424 = vmatprep.subr.mxu0 0.0
        %425 = vmatpush1.msra.mxu0 %v311
        %426 = vmatprep.subr.mxu0 0.0
        %427 = vmatpush1.msra.mxu0 %v314
        %428 = vmatprep.subr.mxu0 0.0
        %429 = vmatpush1.msra.mxu0 %v317
        %430 = vmatprep.subr.mxu0 0.0
        %431 = vmatpush1.msra.mxu0 %v320
        %432 = vmatprep.subr.mxu0 0.0
        %433 = vmatpush1.msra.mxu0 %v323
        %434 = vmatprep.subr.mxu0 0.0
        %435 = vmatpush1.msra.mxu0 %v326
        %436 = vmatprep.subr.mxu0 0.0
        %437 = vmatpush1.msra.mxu0 %v329
        %438 = vmatprep.subr.mxu0 0.0
        %439 = vmatpush1.msra.mxu0 %v332
        %440 = vmatprep.subr.mxu0 0.0
        %441 = vmatpush1.msra.mxu0 %v335
        %442 = vmatprep.subr.mxu0 0.0
        %443 = vmatpush1.msra.mxu0 %v338
        %444 = vmatprep.subr.mxu0 0.0
        %445 = vmatpush1.msra.mxu0 %v341
        %446 = vmatprep.subr.mxu0 0.0
        %447 = vmatpush1.msra.mxu0 %v344
        %448 = vmatprep.subr.mxu0 0.0
        %449 = vmatpush1.msra.mxu0 0.0
        %450 = vmatprep.subr.mxu0 0.0
        %451 = vmatpush1.msra.mxu0 0.0
        %452 = vmatprep.subr.mxu0 0.0
        %453 = vmatpush1.msra.mxu0 0.0
        %454 = vmatprep.subr.mxu0 0.0
        %455 = vmatpush1.msra.mxu0 0.0
        %456 = vmatprep.subr.mxu0 0.0
        %457 = vmatpush1.msra.mxu0 0.0
        %458 = vmatprep.subr.mxu0 0.0
        %459 = vmatpush1.msra.mxu0 0.0
        %460 = vmatprep.subr.mxu0 0.0
        %461 = vmatpush1.msra.mxu0 0.0
        %462 = vmatprep.subr.mxu0 0.0
        %463 = vmatpush1.msra.mxu0 0.0
        %464 = vmatprep.subr.mxu0 0.0
        %465 = vmatpush1.msra.mxu0 0.0
        %466 = vmatprep.subr.mxu0 0.0
        %467 = vmatpush1.msra.mxu0 0.0
        %468 = vmatprep.subr.mxu0 0.0
        %469 = vmatpush1.msra.mxu0 0.0
        %470 = vmatprep.subr.mxu0 0.0
        %471 = vmatpush1.msra.mxu0 0.0
        %472 = vmatprep.subr.mxu0 0.0
        %473 = vmatpush1.msra.mxu0 0.0
        %474 = vmatprep.subr.mxu0 0.0
        %475 = vmatpush1.msra.mxu0 0.0
        %476 = vmatprep.subr.mxu0 0.0
        %477 = vmatpush1.msra.mxu0 0.0
        %478 = vmatprep.subr.mxu0 0.0
        %479 = vmatpush1.msra.mxu0 0.0
        %480 = vmatprep.mubr.f32.mxu0 0.0
        %481 = vmatmul.mubr.f32.gmra.mrb[0].mxu0 %v296
        %v482 = vpop.f32.mrb[0].mxu0
        %v483 = vadd.f32 0.0, %v482
        %v484 = vpop.f32.mrb[0].mxu0
        %485 = vdwg.mxu0
        %vm486 = vcmask 523264
        %v488 = vsel %vm486, %v412, 0
        %v491 = vsel %vm486, %v414, 0
        %493 = vmatprep.subr.mxu0 0.0
        %494 = vmatpush1.xpose.msra.mxu0 %v491
        %495 = vmatprep.subr.mxu0 0.0
        %496 = vmatpush1.xpose.msra.mxu0 0.0
        %497 = vmatprep.subr.mxu0 0.0
        %498 = vmatpush1.xpose.msra.mxu0 0.0
        %499 = vmatprep.subr.mxu0 0.0
        %500 = vmatpush1.xpose.msra.mxu0 0.0
        %501 = vmatprep.subr.mxu0 0.0
        %502 = vmatpush1.xpose.msra.mxu0 0.0
        %503 = vmatprep.subr.mxu0 0.0
        %504 = vmatpush1.xpose.msra.mxu0 0.0
        %505 = vmatprep.subr.mxu0 0.0
        %506 = vmatpush1.xpose.msra.mxu0 0.0
        %507 = vmatprep.subr.mxu0 0.0
        %508 = vmatpush1.xpose.msra.mxu0 0.0
        %509 = vmatprep.subr.mxu0 0.0
        %510 = vmatpush1.xpose.msra.mxu0 0.0
        %511 = vmatprep.subr.mxu0 0.0
        %512 = vmatpush1.xpose.msra.mxu0 0.0
        %513 = vmatprep.subr.mxu0 0.0
        %514 = vmatpush1.xpose.msra.mxu0 0.0
        %515 = vmatprep.subr.mxu0 0.0
        %516 = vmatpush1.xpose.msra.mxu0 0.0
        %517 = vmatprep.subr.mxu0 0.0
        %518 = vmatpush1.xpose.msra.mxu0 0.0
        %519 = vmatprep.subr.mxu0 0.0
        %520 = vmatpush1.xpose.msra.mxu0 0.0
        %521 = vmatprep.subr.mxu0 0.0
        %522 = vmatpush1.xpose.msra.mxu0 0.0
        %523 = vmatprep.subr.mxu0 0.0
        %524 = vmatpush1.xpose.msra.mxu0 0.0
        %525 = vmatprep.subr.mxu0 0.0
        %526 = vmatpush1.xpose.msra.mxu0 0.0
        %527 = vmatprep.subr.mxu0 0.0
        %528 = vmatpush1.xpose.msra.mxu0 0.0
        %529 = vmatprep.subr.mxu0 0.0
        %530 = vmatpush1.xpose.msra.mxu0 0.0
        %531 = vmatprep.subr.mxu0 0.0
        %532 = vmatpush1.xpose.msra.mxu0 0.0
        %533 = vmatprep.subr.mxu0 0.0
        %534 = vmatpush1.xpose.msra.mxu0 0.0
        %535 = vmatprep.subr.mxu0 0.0
        %536 = vmatpush1.xpose.msra.mxu0 0.0
        %537 = vmatprep.subr.mxu0 0.0
        %538 = vmatpush1.xpose.msra.mxu0 0.0
        %539 = vmatprep.subr.mxu0 0.0
        %540 = vmatpush1.xpose.msra.mxu0 0.0
        %541 = vmatprep.subr.mxu0 0.0
        %542 = vmatpush1.xpose.msra.mxu0 0.0
        %543 = vmatprep.subr.mxu0 0.0
        %544 = vmatpush1.xpose.msra.mxu0 0.0
        %545 = vmatprep.subr.mxu0 0.0
        %546 = vmatpush1.xpose.msra.mxu0 0.0
        %547 = vmatprep.subr.mxu0 0.0
        %548 = vmatpush1.xpose.msra.mxu0 0.0
        %549 = vmatprep.subr.mxu0 0.0
        %550 = vmatpush1.xpose.msra.mxu0 0.0
        %551 = vmatprep.subr.mxu0 0.0
        %552 = vmatpush1.xpose.msra.mxu0 0.0
        %553 = vmatprep.subr.mxu0 0.0
        %554 = vmatpush1.xpose.msra.mxu0 0.0
        %555 = vmatprep.subr.mxu0 0.0
        %556 = vmatpush1.xpose.msra.mxu0 0.0
        %557 = vmatprep.mubr.f32.mxu0 0.0
        %558 = vmatmul.mubr.f32.gmra.mrb[0].mxu0 %v488
        %v559 = vpop.f32.mrb[0].mxu0
        %v560 = vadd.f32 0.0, %v559
        %v561 = vpop.f32.mrb[0].mxu0
        %562 = vdwg.mxu0
        %v563 = vmul.f32 %v560, 0.125
        %vm564 = vcmask 64512
        %v565 = vsel %vm564, %v563, -inf
        %566 = vmax.xlane.f32.xlu0 %v565
        %v567 = vpop.xlane.xlu0 %566
        %v568 = vsub.f32 %v563, %v567
        %v569 = vmul.f32 %v568, 1.442695
        %v570 = vpow.pop %v569
        %v571 = vsel %vm564, %v570, 0.0
        %572 = vadd.xlane.f32.xlu0 %v571
        %v573 = vpop.xlane.xlu0 %572
        %v574 = vrcp.pop %v573
        %v575 = vmul.f32 %v570, %v574
        %v577 = vsel %vm564, %v575, 0
        %579 = vmatprep.subr.mxu0 0.0
        %580 = vmatpush1.msra.mxu0 %v483
        %581 = vmatprep.subr.mxu0 0.0
        %582 = vmatpush1.msra.mxu0 0.0
        %583 = vmatprep.subr.mxu0 0.0
        %584 = vmatpush1.msra.mxu0 0.0
        %585 = vmatprep.subr.mxu0 0.0
        %586 = vmatpush1.msra.mxu0 0.0
        %587 = vmatprep.subr.mxu0 0.0
        %588 = vmatpush1.msra.mxu0 0.0
        %589 = vmatprep.subr.mxu0 0.0
        %590 = vmatpush1.msra.mxu0 0.0
        %591 = vmatprep.subr.mxu0 0.0
        %592 = vmatpush1.msra.mxu0 0.0
        %593 = vmatprep.subr.mxu0 0.0
        %594 = vmatpush1.msra.mxu0 0.0
        %595 = vmatprep.subr.mxu0 0.0
        %596 = vmatpush1.msra.mxu0 0.0
        %597 = vmatprep.subr.mxu0 0.0
        %598 = vmatpush1.msra.mxu0 0.0
        %599 = vmatprep.subr.mxu0 0.0
        %600 = vmatpush1.msra.mxu0 0.0
        %601 = vmatprep.subr.mxu0 0.0
        %602 = vmatpush1.msra.mxu0 0.0
        %603 = vmatprep.subr.mxu0 0.0
        %604 = vmatpush1.msra.mxu0 0.0
        %605 = vmatprep.subr.mxu0 0.0
        %606 = vmatpush1.msra.mxu0 0.0
        %607 = vmatprep.subr.mxu0 0.0
        %608 = vmatpush1.msra.mxu0 0.0
        %609 = vmatprep.subr.mxu0 0.0
        %610 = vmatpush1.msra.mxu0 0.0
        %611 = vmatprep.subr.mxu0 0.0
        %612 = vmatpush1.msra.mxu0 0.0
        %613 = vmatprep.subr.mxu0 0.0
        %614 = vmatpush1.msra.mxu0 0.0
        %615 = vmatprep.subr.mxu0 0.0
        %616 = vmatpush1.msra.mxu0 0.0
        %617 = vmatprep.subr.mxu0 0.0
        %618 = vmatpush1.msra.mxu0 0.0
        %619 = vmatprep.subr.mxu0 0.0
        %620 = vmatpush1.msra.mxu0 0.0
        %621 = vmatprep.subr.mxu0 0.0
        %622 = vmatpush1.msra.mxu0 0.0
        %623 = vmatprep.subr.mxu0 0.0
        %624 = vmatpush1.msra.mxu0 0.0
        %625 = vmatprep.subr.mxu0 0.0
        %626 = vmatpush1.msra.mxu0 0.0
        %627 = vmatprep.subr.mxu0 0.0
        %628 = vmatpush1.msra.mxu0 0.0
        %629 = vmatprep.subr.mxu0 0.0
        %630 = vmatpush1.msra.mxu0 0.0
        %631 = vmatprep.subr.mxu0 0.0
        %632 = vmatpush1.msra.mxu0 0.0
        %633 = vmatprep.subr.mxu0 0.0
        %634 = vmatpush1.msra.mxu0 0.0
        %635 = vmatprep.subr.mxu0 0.0
        %636 = vmatpush1.msra.mxu0 0.0
        %637 = vmatprep.subr.mxu0 0.0
        %638 = vmatpush1.msra.mxu0 0.0
        %639 = vmatprep.subr.mxu0 0.0
        %640 = vmatpush1.msra.mxu0 0.0
        %641 = vmatprep.subr.mxu0 0.0
        %642 = vmatpush1.msra.mxu0 0.0
        %643 = vmatprep.mubr.f32.mxu0 0.0
        %644 = vmatmul.mubr.f32.gmra.mrb[0].mxu0 %v577
        %v645 = vpop.f32.mrb[0].mxu0
        %v646 = vadd.f32 0.0, %v645
        %v647 = vpop.f32.mrb[0].mxu0
        %648 = vdwg.mxu0
        %649 = vrot.lane.b32.xlu0 %v412, 64
        %v650 = vpop.permute.xlu0 %649
        %651 = vrot.lane.b32.xlu0 %v414, 64
        %v652 = vpop.permute.xlu0 %651
        %v653 = vsel %vm486, %v650, 0
        %v655 = vsel %vm486, %v652, 0
        %657 = vmatprep.subr.mxu0 0.0
        %658 = vmatpush1.xpose.msra.mxu0 %v655
        %659 = vmatprep.subr.mxu0 0.0
        %660 = vmatpush1.xpose.msra.mxu0 0.0
        %661 = vmatprep.subr.mxu0 0.0
        %662 = vmatpush1.xpose.msra.mxu0 0.0
        %663 = vmatprep.subr.mxu0 0.0
        %664 = vmatpush1.xpose.msra.mxu0 0.0
        %665 = vmatprep.subr.mxu0 0.0
        %666 = vmatpush1.xpose.msra.mxu0 0.0
        %667 = vmatprep.subr.mxu0 0.0
        %668 = vmatpush1.xpose.msra.mxu0 0.0
        %669 = vmatprep.subr.mxu0 0.0
        %670 = vmatpush1.xpose.msra.mxu0 0.0
        %671 = vmatprep.subr.mxu0 0.0
        %672 = vmatpush1.xpose.msra.mxu0 0.0
        %673 = vmatprep.subr.mxu0 0.0
        %674 = vmatpush1.xpose.msra.mxu0 0.0
        %675 = vmatprep.subr.mxu0 0.0
        %676 = vmatpush1.xpose.msra.mxu0 0.0
        %677 = vmatprep.subr.mxu0 0.0
        %678 = vmatpush1.xpose.msra.mxu0 0.0
        %679 = vmatprep.subr.mxu0 0.0
        %680 = vmatpush1.xpose.msra.mxu0 0.0
        %681 = vmatprep.subr.mxu0 0.0
        %682 = vmatpush1.xpose.msra.mxu0 0.0
        %683 = vmatprep.subr.mxu0 0.0
        %684 = vmatpush1.xpose.msra.mxu0 0.0
        %685 = vmatprep.subr.mxu0 0.0
        %686 = vmatpush1.xpose.msra.mxu0 0.0
        %687 = vmatprep.subr.mxu0 0.0
        %688 = vmatpush1.xpose.msra.mxu0 0.0
        %689 = vmatprep.subr.mxu0 0.0
        %690 = vmatpush1.xpose.msra.mxu0 0.0
        %691 = vmatprep.subr.mxu0 0.0
        %692 = vmatpush1.xpose.msra.mxu0 0.0
        %693 = vmatprep.subr.mxu0 0.0
        %694 = vmatpush1.xpose.msra.mxu0 0.0
        %695 = vmatprep.subr.mxu0 0.0
        %696 = vmatpush1.xpose.msra.mxu0 0.0
        %697 = vmatprep.subr.mxu0 0.0
        %698 = vmatpush1.xpose.msra.mxu0 0.0
        %699 = vmatprep.subr.mxu0 0.0
        %700 = vmatpush1.xpose.msra.mxu0 0.0
        %701 = vmatprep.subr.mxu0 0.0
        %702 = vmatpush1.xpose.msra.mxu0 0.0
        %703 = vmatprep.subr.mxu0 0.0
        %704 = vmatpush1.xpose.msra.mxu0 0.0
        %705 = vmatprep.subr.mxu0 0.0
        %706 = vmatpush1.xpose.msra.mxu0 0.0
        %707 = vmatprep.subr.mxu0 0.0
        %708 = vmatpush1.xpose.msra.mxu0 0.0
        %709 = vmatprep.subr.mxu0 0.0
        %710 = vmatpush1.xpose.msra.mxu0 0.0
        %711 = vmatprep.subr.mxu0 0.0
        %712 = vmatpush1.xpose.msra.mxu0 0.0
        %713 = vmatprep.subr.mxu0 0.0
        %714 = vmatpush1.xpose.msra.mxu0 0.0
        %715 = vmatprep.subr.mxu0 0.0
        %716 = vmatpush1.xpose.msra.mxu0 0.0
        %717 = vmatprep.subr.mxu0 0.0
        %718 = vmatpush1.xpose.msra.mxu0 0.0
        %719 = vmatprep.subr.mxu0 0.0
        %720 = vmatpush1.xpose.msra.mxu0 0.0
        %721 = vmatprep.mubr.f32.mxu0 0.0
        %722 = vmatmul.mubr.f32.gmra.mrb[0].mxu0 %v653
        %v723 = vpop.f32.mrb[0].mxu0
        %v724 = vadd.f32 0.0, %v723
        %v725 = vpop.f32.mrb[0].mxu0
        %726 = vdwg.mxu0
        %v727 = vmul.f32 %v724, 0.125
        %v728 = vsel %vm564, %v727, -inf
        %729 = vmax.xlane.f32.xlu0 %v728
        %v730 = vpop.xlane.xlu0 %729
        %v731 = vsub.f32 %v727, %v730
        %v732 = vmul.f32 %v731, 1.442695
        %v733 = vpow.pop %v732
        %v734 = vsel %vm564, %v733, 0.0
        %735 = vadd.xlane.f32.xlu0 %v734
        %v736 = vpop.xlane.xlu0 %735
        %v737 = vrcp.pop %v736
        %v738 = vmul.f32 %v733, %v737
        %740 = vrot.lane.b32.xlu0 %v483, 64
        %v741 = vpop.permute.xlu0 %740
        %v744 = vsel %vm564, %v738, 0
        %746 = vmatprep.subr.mxu0 0.0
        %747 = vmatpush1.msra.mxu0 %v741
        %748 = vmatprep.subr.mxu0 0.0
        %749 = vmatpush1.msra.mxu0 0.0
        %750 = vmatprep.subr.mxu0 0.0
        %751 = vmatpush1.msra.mxu0 0.0
        %752 = vmatprep.subr.mxu0 0.0
        %753 = vmatpush1.msra.mxu0 0.0
        %754 = vmatprep.subr.mxu0 0.0
        %755 = vmatpush1.msra.mxu0 0.0
        %756 = vmatprep.subr.mxu0 0.0
        %757 = vmatpush1.msra.mxu0 0.0
        %758 = vmatprep.subr.mxu0 0.0
        %759 = vmatpush1.msra.mxu0 0.0
        %760 = vmatprep.subr.mxu0 0.0
        %761 = vmatpush1.msra.mxu0 0.0
        %762 = vmatprep.subr.mxu0 0.0
        %763 = vmatpush1.msra.mxu0 0.0
        %764 = vmatprep.subr.mxu0 0.0
        %765 = vmatpush1.msra.mxu0 0.0
        %766 = vmatprep.subr.mxu0 0.0
        %767 = vmatpush1.msra.mxu0 0.0
        %768 = vmatprep.subr.mxu0 0.0
        %769 = vmatpush1.msra.mxu0 0.0
        %770 = vmatprep.subr.mxu0 0.0
        %771 = vmatpush1.msra.mxu0 0.0
        %772 = vmatprep.subr.mxu0 0.0
        %773 = vmatpush1.msra.mxu0 0.0
        %774 = vmatprep.subr.mxu0 0.0
        %775 = vmatpush1.msra.mxu0 0.0
        %776 = vmatprep.subr.mxu0 0.0
        %777 = vmatpush1.msra.mxu0 0.0
        %778 = vmatprep.subr.mxu0 0.0
        %779 = vmatpush1.msra.mxu0 0.0
        %780 = vmatprep.subr.mxu0 0.0
        %781 = vmatpush1.msra.mxu0 0.0
        %782 = vmatprep.subr.mxu0 0.0
        %783 = vmatpush1.msra.mxu0 0.0
        %784 = vmatprep.subr.mxu0 0.0
        %785 = vmatpush1.msra.mxu0 0.0
        %786 = vmatprep.subr.mxu0 0.0
        %787 = vmatpush1.msra.mxu0 0.0
        %788 = vmatprep.subr.mxu0 0.0
        %789 = vmatpush1.msra.mxu0 0.0
        %790 = vmatprep.subr.mxu0 0.0
        %791 = vmatpush1.msra.mxu0 0.0
        %792 = vmatprep.subr.mxu0 0.0
        %793 = vmatpush1.msra.mxu0 0.0
        %794 = vmatprep.subr.mxu0 0.0
        %795 = vmatpush1.msra.mxu0 0.0
        %796 = vmatprep.subr.mxu0 0.0
        %797 = vmatpush1.msra.mxu0 0.0
        %798 = vmatprep.subr.mxu0 0.0
        %799 = vmatpush1.msra.mxu0 0.0
        %800 = vmatprep.subr.mxu0 0.0
        %801 = vmatpush1.msra.mxu0 0.0
        %802 = vmatprep.subr.mxu0 0.0
        %803 = vmatpush1.msra.mxu0 0.0
        %804 = vmatprep.subr.mxu0 0.0
        %805 = vmatpush1.msra.mxu0 0.0
        %806 = vmatprep.subr.mxu0 0.0
        %807 = vmatpush1.msra.mxu0 0.0
        %808 = vmatprep.subr.mxu0 0.0
        %809 = vmatpush1.msra.mxu0 0.0
        %810 = vmatprep.mubr.f32.mxu0 0.0
        %811 = vmatmul.mubr.f32.gmra.mrb[0].mxu0 %v744
        %v812 = vpop.f32.mrb[0].mxu0
        %v813 = vadd.f32 0.0, %v812
        %v814 = vpop.f32.mrb[0].mxu0
        %815 = vdwg.mxu0
        %817 = vrot.lane.b32.xlu0 %v813, 64
        %v818 = vpop.permute.xlu0 %817
        %v820 = vsel %vm486, %v646, %v818
        %v821 = vld [vmem:[#allocation7] sm:$0xff]
        %v822 = vld [vmem:[#allocation7 + $0x8] sm:$0xff]
        %v823 = vld [vmem:[#allocation7 + $0x10] sm:$0xff]
        %v824 = vld [vmem:[#allocation7 + $0x18] sm:$0xff]
        %v825 = vld [vmem:[#allocation7 + $0x20] sm:$0xff]
        %v826 = vld [vmem:[#allocation7 + $0x28] sm:$0xff]
        %v827 = vld [vmem:[#allocation7 + $0x30] sm:$0xff]
        %v828 = vld [vmem:[#allocation7 + $0x38] sm:$0xff]
        %v829 = vld [vmem:[#allocation7 + $0x40] sm:$0xff]
        %v830 = vld [vmem:[#allocation7 + $0x48] sm:$0xff]
        %v831 = vld [vmem:[#allocation7 + $0x50] sm:$0xff]
        %v832 = vld [vmem:[#allocation7 + $0x58] sm:$0xff]
        %v833 = vld [vmem:[#allocation7 + $0x60] sm:$0xff]
        %v834 = vld [vmem:[#allocation7 + $0x68] sm:$0xff]
        %v835 = vld [vmem:[#allocation7 + $0x70] sm:$0xff]
        %v836 = vld [vmem:[#allocation7 + $0x78] sm:$0xff]
        %v837 = vld [vmem:[%s3] sm:$0x1]
        %v839 = vlaneseq
        %v840 = vshrl.u32 %v839, 7
        %v841 = vsub.s32 0, %v840
        %v842 = vrot.slane %v837, %v841
        %844 = vmatprep.subr.mxu0 0.0
        %845 = vmatpush1.msra.mxu0 %v821
        %846 = vmatprep.subr.mxu0 0.0
        %847 = vmatpush1.msra.mxu0 %v822
        %848 = vmatprep.subr.mxu0 0.0
        %849 = vmatpush1.msra.mxu0 %v823
        %850 = vmatprep.subr.mxu0 0.0
        %851 = vmatpush1.msra.mxu0 %v824
        %852 = vmatprep.subr.mxu0 0.0
        %853 = vmatpush1.msra.mxu0 %v825
        %854 = vmatprep.subr.mxu0 0.0
        %855 = vmatpush1.msra.mxu0 %v826
        %856 = vmatprep.subr.mxu0 0.0
        %857 = vmatpush1.msra.mxu0 %v827
        %858 = vmatprep.subr.mxu0 0.0
        %859 = vmatpush1.msra.mxu0 %v828
        %860 = vmatprep.subr.mxu0 0.0
        %861 = vmatpush1.msra.mxu0 %v829
        %862 = vmatprep.subr.mxu0 0.0
        %863 = vmatpush1.msra.mxu0 %v830
        %864 = vmatprep.subr.mxu0 0.0
        %865 = vmatpush1.msra.mxu0 %v831
        %866 = vmatprep.subr.mxu0 0.0
        %867 = vmatpush1.msra.mxu0 %v832
        %868 = vmatprep.subr.mxu0 0.0
        %869 = vmatpush1.msra.mxu0 %v833
        %870 = vmatprep.subr.mxu0 0.0
        %871 = vmatpush1.msra.mxu0 %v834
        %872 = vmatprep.subr.mxu0 0.0
        %873 = vmatpush1.msra.mxu0 %v835
        %874 = vmatprep.subr.mxu0 0.0
        %875 = vmatpush1.msra.mxu0 %v836
        %876 = vmatprep.subr.mxu0 0.0
        %877 = vmatpush1.msra.mxu0 0.0
        %878 = vmatprep.subr.mxu0 0.0
        %879 = vmatpush1.msra.mxu0 0.0
        %880 = vmatprep.subr.mxu0 0.0
        %881 = vmatpush1.msra.mxu0 0.0
        %882 = vmatprep.subr.mxu0 0.0
        %883 = vmatpush1.msra.mxu0 0.0
        %884 = vmatprep.subr.mxu0 0.0
        %885 = vmatpush1.msra.mxu0 0.0
        %886 = vmatprep.subr.mxu0 0.0
        %887 = vmatpush1.msra.mxu0 0.0
        %888 = vmatprep.subr.mxu0 0.0
        %889 = vmatpush1.msra.mxu0 0.0
        %890 = vmatprep.subr.mxu0 0.0
        %891 = vmatpush1.msra.mxu0 0.0
        %892 = vmatprep.subr.mxu0 0.0
        %893 = vmatpush1.msra.mxu0 0.0
        %894 = vmatprep.subr.mxu0 0.0
        %895 = vmatpush1.msra.mxu0 0.0
        %896 = vmatprep.subr.mxu0 0.0
        %897 = vmatpush1.msra.mxu0 0.0
        %898 = vmatprep.subr.mxu0 0.0
        %899 = vmatpush1.msra.mxu0 0.0
        %900 = vmatprep.subr.mxu0 0.0
        %901 = vmatpush1.msra.mxu0 0.0
        %902 = vmatprep.subr.mxu0 0.0
        %903 = vmatpush1.msra.mxu0 0.0
        %904 = vmatprep.subr.mxu0 0.0
        %905 = vmatpush1.msra.mxu0 0.0
        %906 = vmatprep.subr.mxu0 0.0
        %907 = vmatpush1.msra.mxu0 0.0
        %908 = vmatprep.mubr.f32.mxu0 0.0
        %909 = vmatmul.mubr.f32.gmra.mrb[0].mxu0 %v820
        %v910 = vpop.f32.mrb[0].mxu0
        %v911 = vadd.f32 %v842, %v910
        %v912 = vpop.f32.mrb[0].mxu0
        %913 = vdwg.mxu0
        %v914 = vadd.f32 %v911, %v296
        %915 = vadd.xlane.f32.xlu0 %v914
        %v916 = vpop.xlane.xlu0 %915
        %v917 = vrcp.pop 128.0
        %v918 = vmul.f32 %v916, %v917
        %v919 = vsub.f32 %v914, %v918
        %v920 = vmul.f32 %v919, %v919
        %921 = vadd.xlane.f32.xlu0 %v920
        %v922 = vpop.xlane.xlu0 %921
        %v923 = vmul.f32 %v922, %v917
        %v924 = vadd.f32 %v923, 1e-05
        %v925 = vrsqrt.pop %v924
        %v926 = vmul.f32 %v919, %v925
        %v927 = vld [vmem:[%s4] sm:$0x1]
        %v929 = vlaneseq
        %v930 = vshrl.u32 %v929, 7
        %v931 = vsub.s32 0, %v930
        %v932 = vrot.slane %v927, %v931
        %v934 = vmul.f32 %v926, %v932
        %v935 = vld [vmem:[%s5] sm:$0x1]
        %v937 = vlaneseq
        %v938 = vshrl.u32 %v937, 7
        %v939 = vsub.s32 0, %v938
        %v940 = vrot.slane %v935, %v939
        %v942 = vadd.f32 %v934, %v940
        %943 = vst [vmem:[%s295] sm:$0xff] %v942
        %s944 = sand.u32 %s163, 1
        %s945 = scalar_lea.sflag [#allocation4], %s944
        %s946 = sand.u32 %s163, 1
        %s947 = smul.addr %s946, 8
        %s948 = scalar_lea.vmem [#allocation8], %s947
        // Predicated region
        $region57: #{tpu_custom_call.1} parent=43 // pred_check
          %p949 = pneg %p173
        $region58: #{tpu_custom_call.1} parent=43 // pred_check_branch
          %951 = sbr.rel (%p949) target = $region60
        $region59: #{tpu_custom_call.1} parent=43 // pred_region
          %s953 = ssub.s32 128, 128
          %954 = vsyncadd %s945, %s953
          %s955 = smul.addr %s24, 128
          %s956 = scalar_lea.hbm %s6, %s955
          %s958 = sshll.u32 %s948, 4
          %s959 = int_to_ptr.vmem [resolvable:$true] %s958
          %961 = dma.vmem_to_hbm [thread:$0]  %s959, 128, %s956, %s945
        $region60: #{tpu_custom_call.1} parent=43 // pred_fallthru
          _
      $region44: #{tpu_custom_call.1} parent=5 // pred_fallthru
        _
      %p962 = scmp.le.s32.totalorder 2, %s19
      // Predicated region
      $region61: #{tpu_custom_call.1} parent=5 // pred_check
        %p963 = pneg %p962
      $region62: #{tpu_custom_call.1} parent=5 // pred_check_branch
        %965 = sbr.rel (%p963) target = $region64
      $region63: #{tpu_custom_call.1} parent=5 // pred_region
        %s966 = ssub.s32 %s19, 2
        // Predicated region
        $region65: #{tpu_custom_call.1} parent=63 // pred_check
          %p967 = pneg %p179
        $region66: #{tpu_custom_call.1} parent=63 // pred_check_branch
          %969 = sbr.rel (%p967) target = $region68
        $region67: #{tpu_custom_call.1} parent=63 // pred_region
          %s970 = sand.u32 %s164, 1
          %s971 = scalar_lea.sflag [#allocation4], %s970
          %s972 = sand.u32 %s164, 1
          %s973 = smul.addr %s972, 8
          %s974 = scalar_lea.vmem [#allocation8], %s973
          %975 = dma.done %s971, 128
        $region68: #{tpu_custom_call.1} parent=63 // pred_fallthru
          _
      $region64: #{tpu_custom_call.1} parent=5 // pred_fallthru
        _
    $region6: #{tpu_custom_call.1} parent=1 // loop_footer
      %s23 = sadd.s32 1, %s19
    $region7: #{tpu_custom_call.1} parent=1 // loop_footer_branch
      %18 = sbr.rel target = $region3
    $region8: #{tpu_custom_call.1} parent=1 // loop_exit
      _
    %976 = vsyncpa [#allocation3], 1
    %s977 = scalar_lea.sflag [#allocation3], 1
    %978 = vsyncpa %s977, 1
    %979 = vsyncpa [#allocation6], 1
    %980 = vsyncpa [#allocation4], 1
    %s981 = scalar_lea.sflag [#allocation4], 1
    %982 = vsyncpa %s981, 1

</llo_original>
